<compile_context>
chip_gen: v5e
topology: v5e:2x2
jax: 0.10.0
libtpu: 0.0.40
codegen_flags: <defaults>
</compile_context>

<pallas_src>
import jax
import jax.numpy as jnp
from jax.experimental import pallas as pl
from jax.experimental.pallas import tpu as pltpu


def _round_up(a, m):
    return (a + m - 1) // m * m


def _leaky(x, slope=0.2):
    return jnp.where(x > 0, x, slope * x)


# --------------------------------------------------------------------------
# Kernel
# --------------------------------------------------------------------------
def genotype_vae_kernel(
    x_ref, eps_ref,
    w1_ref, b1_ref, w2_ref, b2_ref,
    wmuv_ref, bmuv_ref,
    w4_ref, b4_ref, w5_ref, b5_ref,
    w6_ref, b6_ref,
    y_ref, packed_ref,
):
    bf = jnp.bfloat16
    zp = eps_ref.shape[1]  # lane-padded latent width (multiple of 128)

    # ---- encoder (BN already folded into W/b) ----
    x = x_ref[...].astype(bf)
    h = _leaky(jnp.dot(x, w1_ref[...], preferred_element_type=jnp.float32)
               + b1_ref[...])
    h = _leaky(jnp.dot(h.astype(bf), w2_ref[...],
                       preferred_element_type=jnp.float32) + b2_ref[...])

    # ---- merged mu | logvar head (single MXU launch) ----
    mulv = jnp.dot(h.astype(bf), wmuv_ref[...],
                   preferred_element_type=jnp.float32) + bmuv_ref[...]
    mu = mulv[:, :zp]          # lanes [0, zp)      (128-aligned slice)
    lv = mulv[:, zp:]          # lanes [zp, 2*zp)   (128-aligned slice)

    # ---- sampling: z = exp(0.5*logvar) * (0.01*eps) + mu ----
    # padded lanes: mu=lv=eps=0  ->  z=0, and w4 pad rows are 0, so decoder is exact
    z = jnp.exp(0.5 * lv) * (0.01 * eps_ref[...]) + mu

    # ---- decoder ----
    d = _leaky(jnp.dot(z.astype(bf), w4_ref[...],
                       preferred_element_type=jnp.float32) + b4_ref[...])
    d = _leaky(jnp.dot(d.astype(bf), w5_ref[...],
                       preferred_element_type=jnp.float32) + b5_ref[...])
    logits = jnp.dot(d.astype(bf), w6_ref[...],
                     preferred_element_type=jnp.float32) + b6_ref[...]

    # sigmoid via EUP reciprocal (separate issue slot from the VPU work)
    y_ref[...] = pl.reciprocal(1.0 + jnp.exp(-logits), approx=True)

    # lane-dense packed output: [ mu | logvar | z ], each 128-lane aligned
    packed_ref[:, : 2 * zp] = mulv
    packed_ref[:, 2 * zp:] = z


# --------------------------------------------------------------------------
# Parameter construction (PyTorch-like raw params, then fused kernel params)
# --------------------------------------------------------------------------
def _linear_params(key, d_in, d_out, scale=0.05):
    kw, kb = jax.random.split(key)
    w = (scale * jax.random.normal(kw, (d_in, d_out))).astype(jnp.float32)  # (in, out)
    b = (scale * jax.random.normal(kb, (1, d_out))).astype(jnp.float32)
    return w, b


def _bn_params(key, d):
    kg, kb, km, kv = jax.random.split(key, 4)
    gamma = (1.0 + 0.05 * jax.random.normal(kg, (1, d))).astype(jnp.float32)
    beta = (0.05 * jax.random.normal(kb, (1, d))).astype(jnp.float32)
    mean = (0.05 * jax.random.normal(km, (1, d))).astype(jnp.float32)
    var = (1.0 + 0.05 * jnp.abs(jax.random.normal(kv, (1, d)))).astype(jnp.float32)
    return gamma, beta, mean, var


def init_raw_params(key, x_dim, z_dim):
    ks = jax.random.split(key, 11)
    p = {}
    p["w1"], p["b1"] = _linear_params(ks[0], x_dim, 512)
    p["bn1"] = _bn_params(ks[1], 512)
    p["w2"], p["b2"] = _linear_params(ks[2], 512, 256)
    p["bn2"] = _bn_params(ks[3], 256)
    p["wmu"], p["bmu"] = _linear_params(ks[4], 256, z_dim)
    p["wlv"], p["blv"] = _linear_params(ks[5], 256, z_dim)
    p["w4"], p["b4"] = _linear_params(ks[6], z_dim, 256)
    p["bn4"] = _bn_params(ks[7], 256)
    p["w5"], p["b5"] = _linear_params(ks[8], 256, 512)
    p["bn5"] = _bn_params(ks[9], 512)
    p["w6"], p["b6"] = _linear_params(ks[10], 512, x_dim)
    return p


def fuse_params(raw, z_dim, z_pad, bn_eps=1e-5):
    """Fold eval-mode BN into Linear (in f32), merge+pad mu/logvar head, cast W to bf16."""
    bf = jnp.bfloat16

    def fold(w, b, bn):
        gamma, beta, mean, var = bn
        s = gamma / jnp.sqrt(var + bn_eps)      # (1, out)
        t = beta - mean * s
        return w * s, b * s + t

    w1, b1 = fold(raw["w1"], raw["b1"], raw["bn1"])
    w2, b2 = fold(raw["w2"], raw["b2"], raw["bn2"])

    # merged, lane-padded mu/logvar head: cols [0, z_pad)->mu, [z_pad, 2*z_pad)->logvar
    d_h = raw["wmu"].shape[0]
    wmuv = jnp.zeros((d_h, 2 * z_pad), jnp.float32)
    wmuv = wmuv.at[:, :z_dim].set(raw["wmu"]).at[:, z_pad:z_pad + z_dim].set(raw["wlv"])
    bmuv = jnp.zeros((1, 2 * z_pad), jnp.float32)
    bmuv = bmuv.at[:, :z_dim].set(raw["bmu"]).at[:, z_pad:z_pad + z_dim].set(raw["blv"])

    # decoder first layer: zero-pad latent rows, then fold bn4
    w4p = jnp.zeros((z_pad, raw["w4"].shape[1]), jnp.float32).at[:z_dim].set(raw["w4"])
    w4, b4 = fold(w4p, raw["b4"], raw["bn4"])
    w5, b5 = fold(raw["w5"], raw["b5"], raw["bn5"])
    w6, b6 = raw["w6"], raw["b6"]

    return dict(
        w1=w1.astype(bf), b1=b1,
        w2=w2.astype(bf), b2=b2,
        wmuv=wmuv.astype(bf), bmuv=bmuv,
        w4=w4.astype(bf), b4=b4,
        w5=w5.astype(bf), b5=b5,
        w6=w6.astype(bf), b6=b6,
    )


# --------------------------------------------------------------------------
# Wrapper
# --------------------------------------------------------------------------
def genotype_vae_forward(x, eps, fused, z_dim, *, block_b=128):
    B, x_dim = x.shape
    z_pad = fused["wmuv"].shape[1] // 2

    # batch tiling: TB rows per grid step (multiple of 8 sublanes)
    if B <= block_b:
        TB = max(8, _round_up(B, 8))
        B_pad = TB
    else:
        TB = block_b
        B_pad = _round_up(B, TB)

    xp = x if B_pad == B else jnp.zeros((B_pad, x_dim), x.dtype).at[:B].set(x)
    ep = jnp.zeros((B_pad, z_pad), jnp.float32).at[:B, :z_dim].set(eps)

    weight_keys = ["w1", "b1", "w2", "b2", "wmuv", "bmuv",
                   "w4", "b4", "w5", "b5", "w6", "b6"]
    weights = [fused[k] for k in weight_keys]

    def act_spec(cols):
        return pl.BlockSpec((TB, cols), lambda i: (i, 0))

    def const_spec(a):
        return pl.BlockSpec(a.shape, lambda i: (0, 0))   # VMEM-resident across steps

    in_specs = [act_spec(x_dim), act_spec(z_pad)] + [const_spec(w) for w in weights]

    out_shapes = (
        jax.ShapeDtypeStruct((B_pad, x_dim), jnp.float32),       # y (reconstruction)
        jax.ShapeDtypeStruct((B_pad, 3 * z_pad), jnp.float32),   # [mu | logvar | z]
    )
    out_specs = (
        pl.BlockSpec((TB, x_dim), lambda i: (i, 0)),
        pl.BlockSpec((TB, 3 * z_pad), lambda i: (i, 0)),
    )

    inputs = [xp, ep] + weights
    flops = 2 * B_pad * (x_dim * 512 + 512 * 256 + 256 * (2 * z_pad)
                         + z_pad * 256 + 256 * 512 + 512 * x_dim)
    bytes_accessed = int(
        sum(int(a.size) * a.dtype.itemsize for a in inputs)
        + B_pad * x_dim * 4 + B_pad * 3 * z_pad * 4
    )
    cost = pl.CostEstimate(
        flops=int(flops),
        transcendentals=int(B_pad * (z_pad + x_dim)),
        bytes_accessed=bytes_accessed,
    )

    y_pad, packed = pl.pallas_call(
        genotype_vae_kernel,
        grid=(B_pad // TB,),
        in_specs=in_specs,
        out_specs=out_specs,
        out_shape=out_shapes,
        compiler_params=pltpu.CompilerParams(
            dimension_semantics=("parallel",),
        ),
        cost_estimate=cost,
    )(*inputs)

    y = y_pad[:B]
    mu = packed[:B, :z_dim]
    lv = packed[:B, z_pad:z_pad + z_dim]
    z = packed[:B, 2 * z_pad:2 * z_pad + z_dim]
    return y, mu, lv, z


# --------------------------------------------------------------------------
# Pure-JAX reference (eval-mode BN, identity dropout) for validation
# --------------------------------------------------------------------------
def reference_forward(x, eps, raw, bn_eps=1e-5):
    def bn(h, gamma, beta, mean, var):
        return (h - mean) / jnp.sqrt(var + bn_eps) * gamma + beta

    h = _leaky(bn(x @ raw["w1"] + raw["b1"], *raw["bn1"]))
    h = _leaky(bn(h @ raw["w2"] + raw["b2"], *raw["bn2"]))
    mu = h @ raw["wmu"] + raw["bmu"]
    lv = h @ raw["wlv"] + raw["blv"]
    z = jnp.exp(0.5 * lv) * (0.01 * eps) + mu
    d = _leaky(bn(z @ raw["w4"] + raw["b4"], *raw["bn4"]))
    d = _leaky(bn(d @ raw["w5"] + raw["b5"], *raw["bn5"]))
    y = jax.nn.sigmoid(d @ raw["w6"] + raw["b6"])
    return y, mu, lv, z


if __name__ == "__main__":
    key = jax.random.PRNGKey(0)
    k_params, k_x, k_eps = jax.random.split(key, 3)

    B, X_DIM, Z_DIM = 8, 256, 32
    Z_PAD = _round_up(Z_DIM, 128)

    raw = init_raw_params(k_params, X_DIM, Z_DIM)
    fused = fuse_params(raw, Z_DIM, Z_PAD)

    # genotype inputs are binary indicator vectors
    x = jax.random.bernoulli(k_x, p=0.1, shape=(B, X_DIM)).astype(jnp.float32)
    eps = jax.random.normal(k_eps, (B, Z_DIM), dtype=jnp.float32)

    y, z_mean, z_logvar, z = genotype_vae_forward(x, eps, fused, Z_DIM)
    jax.block_until_ready((y, z_mean, z_logvar, z))

    y_r, mu_r, lv_r, z_r = reference_forward(x, eps, raw)

    assert y.shape == (B, X_DIM)
    assert z_mean.shape == (B, Z_DIM)
    assert z_logvar.shape == (B, Z_DIM)
    assert z.shape == (B, Z_DIM)
    for got, ref in ((y, y_r), (z_mean, mu_r), (z_logvar, lv_r), (z, z_r)):
        assert bool(jnp.all(jnp.isfinite(got)))
        assert bool(jnp.allclose(got, ref, atol=5e-2, rtol=5e-2))

    print("KERNEL_OK")
</pallas_src>

<mosaic_0001>
module attributes {stable_mosaic.version = 11 : i64} {
  func.func @genotype_vae_kernel(%arg0: i32, %arg1: memref<8x256xf32, #tpu.memory_space<vmem>>, %arg2: memref<8x128xf32, #tpu.memory_space<vmem>>, %arg3: memref<256x512xbf16, #tpu.memory_space<vmem>>, %arg4: memref<1x512xf32, #tpu.memory_space<vmem>>, %arg5: memref<512x256xbf16, #tpu.memory_space<vmem>>, %arg6: memref<1x256xf32, #tpu.memory_space<vmem>>, %arg7: memref<256x256xbf16, #tpu.memory_space<vmem>>, %arg8: memref<1x256xf32, #tpu.memory_space<vmem>>, %arg9: memref<128x256xbf16, #tpu.memory_space<vmem>>, %arg10: memref<1x256xf32, #tpu.memory_space<vmem>>, %arg11: memref<256x512xbf16, #tpu.memory_space<vmem>>, %arg12: memref<1x512xf32, #tpu.memory_space<vmem>>, %arg13: memref<512x256xbf16, #tpu.memory_space<vmem>>, %arg14: memref<1x256xf32, #tpu.memory_space<vmem>>, %arg15: memref<8x256xf32, #tpu.memory_space<vmem>>, %arg16: memref<8x384xf32, #tpu.memory_space<vmem>>) attributes {dimension_semantics = [#tpu.dimension_semantics<parallel>], iteration_bounds = array<i64: 1>, scalar_prefetch = 0 : i64, scratch_operands = 0 : i64, tpu.core_type = #tpu.core_type<tc>, window_params = [{transform_indices = @transform_0, window_bounds = array<i64: 8, 256>}, {transform_indices = @transform_1, window_bounds = array<i64: 8, 128>}, {pipeline_mode = #tpu.pipeline_mode<synchronous>, transform_indices = @transform_2, window_bounds = array<i64: 256, 512>}, {pipeline_mode = #tpu.pipeline_mode<synchronous>, transform_indices = @transform_3, window_bounds = array<i64: 1, 512>}, {pipeline_mode = #tpu.pipeline_mode<synchronous>, transform_indices = @transform_4, window_bounds = array<i64: 512, 256>}, {pipeline_mode = #tpu.pipeline_mode<synchronous>, transform_indices = @transform_5, window_bounds = array<i64: 1, 256>}, {pipeline_mode = #tpu.pipeline_mode<synchronous>, transform_indices = @transform_6, window_bounds = array<i64: 256, 256>}, {pipeline_mode = #tpu.pipeline_mode<synchronous>, transform_indices = @transform_7, window_bounds = array<i64: 1, 256>}, {pipeline_mode = #tpu.pipeline_mode<synchronous>, transform_indices = @transform_8, window_bounds = array<i64: 128, 256>}, {pipeline_mode = #tpu.pipeline_mode<synchronous>, transform_indices = @transform_9, window_bounds = array<i64: 1, 256>}, {pipeline_mode = #tpu.pipeline_mode<synchronous>, transform_indices = @transform_10, window_bounds = array<i64: 256, 512>}, {pipeline_mode = #tpu.pipeline_mode<synchronous>, transform_indices = @transform_11, window_bounds = array<i64: 1, 512>}, {pipeline_mode = #tpu.pipeline_mode<synchronous>, transform_indices = @transform_12, window_bounds = array<i64: 512, 256>}, {pipeline_mode = #tpu.pipeline_mode<synchronous>, transform_indices = @transform_13, window_bounds = array<i64: 1, 256>}, {transform_indices = @transform_14, window_bounds = array<i64: 8, 256>}, {transform_indices = @transform_15, window_bounds = array<i64: 8, 384>}]} {
    %c0 = arith.constant 0 : index
    %c0_0 = arith.constant 0 : index
    %0 = vector.load %arg1[%c0, %c0_0] : memref<8x256xf32, #tpu.memory_space<vmem>>, vector<8x256xf32>
    %1 = arith.truncf %0 : vector<8x256xf32> to vector<8x256xbf16>
    %c0_1 = arith.constant 0 : index
    %c0_2 = arith.constant 0 : index
    %2 = vector.load %arg3[%c0_1, %c0_2] : memref<256x512xbf16, #tpu.memory_space<vmem>>, vector<256x512xbf16>
    %cst = arith.constant dense<0.000000e+00> : vector<8x512xf32>
    %3 = tpu.matmul %1, %2, %cst {dimension_numbers = #tpu.dot_dimension_numbers<[1], [0], [0], [1], [0, 0, 1, 1], [], []>} : vector<8x256xbf16>, vector<256x512xbf16>, vector<8x512xf32> -> vector<8x512xf32>
    %c0_3 = arith.constant 0 : index
    %c0_4 = arith.constant 0 : index
    %4 = vector.load %arg4[%c0_3, %c0_4] : memref<1x512xf32, #tpu.memory_space<vmem>>, vector<1x512xf32>
    %5 = vector.broadcast %4 : vector<1x512xf32> to vector<8x512xf32>
    %6 = arith.addf %3, %5 : vector<8x512xf32>
    %cst_5 = arith.constant 0.000000e+00 : f32
    %7 = vector.broadcast %cst_5 : f32 to vector<8x512xf32>
    %8 = arith.cmpf ogt, %6, %7 : vector<8x512xf32>
    %cst_6 = arith.constant 2.000000e-01 : f32
    %9 = vector.broadcast %cst_6 : f32 to vector<8x512xf32>
    %10 = arith.mulf %9, %6 : vector<8x512xf32>
    %11 = arith.select %8, %6, %10 : vector<8x512xi1>, vector<8x512xf32>
    %12 = arith.truncf %11 : vector<8x512xf32> to vector<8x512xbf16>
    %c0_7 = arith.constant 0 : index
    %c0_8 = arith.constant 0 : index
    %13 = vector.load %arg5[%c0_7, %c0_8] : memref<512x256xbf16, #tpu.memory_space<vmem>>, vector<512x256xbf16>
    %cst_9 = arith.constant dense<0.000000e+00> : vector<8x256xf32>
    %14 = tpu.matmul %12, %13, %cst_9 {dimension_numbers = #tpu.dot_dimension_numbers<[1], [0], [0], [1], [0, 0, 1, 1], [], []>} : vector<8x512xbf16>, vector<512x256xbf16>, vector<8x256xf32> -> vector<8x256xf32>
    %c0_10 = arith.constant 0 : index
    %c0_11 = arith.constant 0 : index
    %15 = vector.load %arg6[%c0_10, %c0_11] : memref<1x256xf32, #tpu.memory_space<vmem>>, vector<1x256xf32>
    %16 = vector.broadcast %15 : vector<1x256xf32> to vector<8x256xf32>
    %17 = arith.addf %14, %16 : vector<8x256xf32>
    %cst_12 = arith.constant 0.000000e+00 : f32
    %18 = vector.broadcast %cst_12 : f32 to vector<8x256xf32>
    %19 = arith.cmpf ogt, %17, %18 : vector<8x256xf32>
    %cst_13 = arith.constant 2.000000e-01 : f32
    %20 = vector.broadcast %cst_13 : f32 to vector<8x256xf32>
    %21 = arith.mulf %20, %17 : vector<8x256xf32>
    %22 = arith.select %19, %17, %21 : vector<8x256xi1>, vector<8x256xf32>
    %23 = arith.truncf %22 : vector<8x256xf32> to vector<8x256xbf16>
    %c0_14 = arith.constant 0 : index
    %c0_15 = arith.constant 0 : index
    %24 = vector.load %arg7[%c0_14, %c0_15] : memref<256x256xbf16, #tpu.memory_space<vmem>>, vector<256x256xbf16>
    %cst_16 = arith.constant dense<0.000000e+00> : vector<8x256xf32>
    %25 = tpu.matmul %23, %24, %cst_16 {dimension_numbers = #tpu.dot_dimension_numbers<[1], [0], [0], [1], [0, 0, 1, 1], [], []>} : vector<8x256xbf16>, vector<256x256xbf16>, vector<8x256xf32> -> vector<8x256xf32>
    %c0_17 = arith.constant 0 : index
    %c0_18 = arith.constant 0 : index
    %26 = vector.load %arg8[%c0_17, %c0_18] : memref<1x256xf32, #tpu.memory_space<vmem>>, vector<1x256xf32>
    %27 = vector.broadcast %26 : vector<1x256xf32> to vector<8x256xf32>
    %28 = arith.addf %25, %27 : vector<8x256xf32>
    %29 = vector.extract_strided_slice %28 {offsets = [0, 0], sizes = [8, 128], strides = [1, 1]} : vector<8x256xf32> to vector<8x128xf32>
    %30 = vector.extract_strided_slice %28 {offsets = [0, 128], sizes = [8, 128], strides = [1, 1]} : vector<8x256xf32> to vector<8x128xf32>
    %cst_19 = arith.constant 5.000000e-01 : f32
    %31 = vector.broadcast %cst_19 : f32 to vector<8x128xf32>
    %32 = arith.mulf %31, %30 : vector<8x128xf32>
    %33 = math.exp %32 : vector<8x128xf32>
    %c0_20 = arith.constant 0 : index
    %c0_21 = arith.constant 0 : index
    %34 = vector.load %arg2[%c0_20, %c0_21] : memref<8x128xf32, #tpu.memory_space<vmem>>, vector<8x128xf32>
    %cst_22 = arith.constant 0.00999999977 : f32
    %35 = vector.broadcast %cst_22 : f32 to vector<8x128xf32>
    %36 = arith.mulf %35, %34 : vector<8x128xf32>
    %37 = arith.mulf %33, %36 : vector<8x128xf32>
    %38 = arith.addf %37, %29 : vector<8x128xf32>
    %39 = arith.truncf %38 : vector<8x128xf32> to vector<8x128xbf16>
    %c0_23 = arith.constant 0 : index
    %c0_24 = arith.constant 0 : index
    %40 = vector.load %arg9[%c0_23, %c0_24] : memref<128x256xbf16, #tpu.memory_space<vmem>>, vector<128x256xbf16>
    %cst_25 = arith.constant dense<0.000000e+00> : vector<8x256xf32>
    %41 = tpu.matmul %39, %40, %cst_25 {dimension_numbers = #tpu.dot_dimension_numbers<[1], [0], [0], [1], [0, 0, 1, 1], [], []>} : vector<8x128xbf16>, vector<128x256xbf16>, vector<8x256xf32> -> vector<8x256xf32>
    %c0_26 = arith.constant 0 : index
    %c0_27 = arith.constant 0 : index
    %42 = vector.load %arg10[%c0_26, %c0_27] : memref<1x256xf32, #tpu.memory_space<vmem>>, vector<1x256xf32>
    %43 = vector.broadcast %42 : vector<1x256xf32> to vector<8x256xf32>
    %44 = arith.addf %41, %43 : vector<8x256xf32>
    %cst_28 = arith.constant 0.000000e+00 : f32
    %45 = vector.broadcast %cst_28 : f32 to vector<8x256xf32>
    %46 = arith.cmpf ogt, %44, %45 : vector<8x256xf32>
    %cst_29 = arith.constant 2.000000e-01 : f32
    %47 = vector.broadcast %cst_29 : f32 to vector<8x256xf32>
    %48 = arith.mulf %47, %44 : vector<8x256xf32>
    %49 = arith.select %46, %44, %48 : vector<8x256xi1>, vector<8x256xf32>
    %50 = arith.truncf %49 : vector<8x256xf32> to vector<8x256xbf16>
    %c0_30 = arith.constant 0 : index
    %c0_31 = arith.constant 0 : index
    %51 = vector.load %arg11[%c0_30, %c0_31] : memref<256x512xbf16, #tpu.memory_space<vmem>>, vector<256x512xbf16>
    %cst_32 = arith.constant dense<0.000000e+00> : vector<8x512xf32>
    %52 = tpu.matmul %50, %51, %cst_32 {dimension_numbers = #tpu.dot_dimension_numbers<[1], [0], [0], [1], [0, 0, 1, 1], [], []>} : vector<8x256xbf16>, vector<256x512xbf16>, vector<8x512xf32> -> vector<8x512xf32>
    %c0_33 = arith.constant 0 : index
    %c0_34 = arith.constant 0 : index
    %53 = vector.load %arg12[%c0_33, %c0_34] : memref<1x512xf32, #tpu.memory_space<vmem>>, vector<1x512xf32>
    %54 = vector.broadcast %53 : vector<1x512xf32> to vector<8x512xf32>
    %55 = arith.addf %52, %54 : vector<8x512xf32>
    %cst_35 = arith.constant 0.000000e+00 : f32
    %56 = vector.broadcast %cst_35 : f32 to vector<8x512xf32>
    %57 = arith.cmpf ogt, %55, %56 : vector<8x512xf32>
    %cst_36 = arith.constant 2.000000e-01 : f32
    %58 = vector.broadcast %cst_36 : f32 to vector<8x512xf32>
    %59 = arith.mulf %58, %55 : vector<8x512xf32>
    %60 = arith.select %57, %55, %59 : vector<8x512xi1>, vector<8x512xf32>
    %61 = arith.truncf %60 : vector<8x512xf32> to vector<8x512xbf16>
    %c0_37 = arith.constant 0 : index
    %c0_38 = arith.constant 0 : index
    %62 = vector.load %arg13[%c0_37, %c0_38] : memref<512x256xbf16, #tpu.memory_space<vmem>>, vector<512x256xbf16>
    %cst_39 = arith.constant dense<0.000000e+00> : vector<8x256xf32>
    %63 = tpu.matmul %61, %62, %cst_39 {dimension_numbers = #tpu.dot_dimension_numbers<[1], [0], [0], [1], [0, 0, 1, 1], [], []>} : vector<8x512xbf16>, vector<512x256xbf16>, vector<8x256xf32> -> vector<8x256xf32>
    %c0_40 = arith.constant 0 : index
    %c0_41 = arith.constant 0 : index
    %64 = vector.load %arg14[%c0_40, %c0_41] : memref<1x256xf32, #tpu.memory_space<vmem>>, vector<1x256xf32>
    %65 = vector.broadcast %64 : vector<1x256xf32> to vector<8x256xf32>
    %66 = arith.addf %63, %65 : vector<8x256xf32>
    %cst_42 = arith.constant 0.000000e+00 : f32
    %67 = vector.broadcast %cst_42 : f32 to vector<8x256xf32>
    %68 = arith.subf %67, %66 : vector<8x256xf32>
    %69 = math.exp %68 : vector<8x256xf32>
    %cst_43 = arith.constant 1.000000e+00 : f32
    %70 = vector.broadcast %cst_43 : f32 to vector<8x256xf32>
    %71 = arith.addf %70, %69 : vector<8x256xf32>
    %72 = tpu.reciprocal %71 {approx = true} : vector<8x256xf32> -> vector<8x256xf32>
    %c0_44 = arith.constant 0 : index
    %c0_45 = arith.constant 0 : index
    %73 = vector.load %arg15[%c0_44, %c0_45] : memref<8x256xf32, #tpu.memory_space<vmem>>, vector<8x256xf32>
    tpu.vector_store %arg15[%c0_44, %c0_45], %72 {strides = array<i32>} : memref<8x256xf32, #tpu.memory_space<vmem>>, vector<8x256xf32>,
    %c0_46 = arith.constant 0 : index
    %c0_47 = arith.constant 0 : index
    %74 = vector.load %arg16[%c0_46, %c0_47] : memref<8x384xf32, #tpu.memory_space<vmem>>, vector<8x256xf32>
    tpu.vector_store %arg16[%c0_46, %c0_47], %28 {strides = array<i32>} : memref<8x384xf32, #tpu.memory_space<vmem>>, vector<8x256xf32>,
    %c0_48 = arith.constant 0 : index
    %c256 = arith.constant 256 : index
    %75 = vector.load %arg16[%c0_48, %c256] : memref<8x384xf32, #tpu.memory_space<vmem>>, vector<8x128xf32>
    tpu.vector_store %arg16[%c0_48, %c256], %38 {strides = array<i32>} : memref<8x384xf32, #tpu.memory_space<vmem>>, vector<8x128xf32>,
    return
  }
  func.func @transform_0(%arg0: i32) -> (i32, i32) {
    %c0_i32 = arith.constant 0 : i32
    %c0_i32_0 = arith.constant 0 : i32
    return %arg0, %c0_i32 : i32, i32
  }
  func.func @transform_1(%arg0: i32) -> (i32, i32) {
    %c0_i32 = arith.constant 0 : i32
    %c0_i32_0 = arith.constant 0 : i32
    return %arg0, %c0_i32 : i32, i32
  }
  func.func @transform_2(%arg0: i32) -> (i32, i32) {
    %c0_i32 = arith.constant 0 : i32
    %c0_i32_0 = arith.constant 0 : i32
    %c0_i32_1 = arith.constant 0 : i32
    return %c0_i32, %c0_i32_0 : i32, i32
  }
  func.func @transform_3(%arg0: i32) -> (i32, i32) {
    %c0_i32 = arith.constant 0 : i32
    %c0_i32_0 = arith.constant 0 : i32
    %c0_i32_1 = arith.constant 0 : i32
    return %c0_i32, %c0_i32_0 : i32, i32
  }
  func.func @transform_4(%arg0: i32) -> (i32, i32) {
    %c0_i32 = arith.constant 0 : i32
    %c0_i32_0 = arith.constant 0 : i32
    %c0_i32_1 = arith.constant 0 : i32
    return %c0_i32, %c0_i32_0 : i32, i32
  }
  func.func @transform_5(%arg0: i32) -> (i32, i32) {
    %c0_i32 = arith.constant 0 : i32
    %c0_i32_0 = arith.constant 0 : i32
    %c0_i32_1 = arith.constant 0 : i32
    return %c0_i32, %c0_i32_0 : i32, i32
  }
  func.func @transform_6(%arg0: i32) -> (i32, i32) {
    %c0_i32 = arith.constant 0 : i32
    %c0_i32_0 = arith.constant 0 : i32
    %c0_i32_1 = arith.constant 0 : i32
    return %c0_i32, %c0_i32_0 : i32, i32
  }
  func.func @transform_7(%arg0: i32) -> (i32, i32) {
    %c0_i32 = arith.constant 0 : i32
    %c0_i32_0 = arith.constant 0 : i32
    %c0_i32_1 = arith.constant 0 : i32
    return %c0_i32, %c0_i32_0 : i32, i32
  }
  func.func @transform_8(%arg0: i32) -> (i32, i32) {
    %c0_i32 = arith.constant 0 : i32
    %c0_i32_0 = arith.constant 0 : i32
    %c0_i32_1 = arith.constant 0 : i32
    return %c0_i32, %c0_i32_0 : i32, i32
  }
  func.func @transform_9(%arg0: i32) -> (i32, i32) {
    %c0_i32 = arith.constant 0 : i32
    %c0_i32_0 = arith.constant 0 : i32
    %c0_i32_1 = arith.constant 0 : i32
    return %c0_i32, %c0_i32_0 : i32, i32
  }
  func.func @transform_10(%arg0: i32) -> (i32, i32) {
    %c0_i32 = arith.constant 0 : i32
    %c0_i32_0 = arith.constant 0 : i32
    %c0_i32_1 = arith.constant 0 : i32
    return %c0_i32, %c0_i32_0 : i32, i32
  }
  func.func @transform_11(%arg0: i32) -> (i32, i32) {
    %c0_i32 = arith.constant 0 : i32
    %c0_i32_0 = arith.constant 0 : i32
    %c0_i32_1 = arith.constant 0 : i32
    return %c0_i32, %c0_i32_0 : i32, i32
  }
  func.func @transform_12(%arg0: i32) -> (i32, i32) {
    %c0_i32 = arith.constant 0 : i32
    %c0_i32_0 = arith.constant 0 : i32
    %c0_i32_1 = arith.constant 0 : i32
    return %c0_i32, %c0_i32_0 : i32, i32
  }
  func.func @transform_13(%arg0: i32) -> (i32, i32) {
    %c0_i32 = arith.constant 0 : i32
    %c0_i32_0 = arith.constant 0 : i32
    %c0_i32_1 = arith.constant 0 : i32
    return %c0_i32, %c0_i32_0 : i32, i32
  }
  func.func @transform_14(%arg0: i32) -> (i32, i32) {
    %c0_i32 = arith.constant 0 : i32
    %c0_i32_0 = arith.constant 0 : i32
    return %arg0, %c0_i32 : i32, i32
  }
  func.func @transform_15(%arg0: i32) -> (i32, i32) {
    %c0_i32 = arith.constant 0 : i32
    %c0_i32_0 = arith.constant 0 : i32
    return %arg0, %c0_i32 : i32, i32
  }
}

</mosaic_0001>

<llo_original>
// kernel: tpu_custom_call.1
$region0: #{tpu_custom_call.1}
  #allocation0 [shape = 'u32[]', space=smem, size = 0x4, offset = 0x4, fixed_abs, tag = 'smem constant byte address 0x4 - core index']
  #allocation1 [shape = 'u32[72,128]{1,0:T(1,128)}', space=vmem, size = 0x9000, scoped, tag = 'internal scratch']
  %s0 = inlined_call_operand.hbm [shape: f32[8,256], index: 0, kind: input, shape index: {}]
  %s1 = inlined_call_operand.hbm [shape: f32[8,128], index: 1, kind: input, shape index: {}]
  %s2 = inlined_call_operand.hbm [shape: bf16[256,512], index: 2, kind: input, shape index: {}]
  %s3 = inlined_call_operand.hbm [shape: f32[1,512], index: 3, kind: input, shape index: {}]
  %s4 = inlined_call_operand.hbm [shape: bf16[512,256], index: 4, kind: input, shape index: {}]
  %s5 = inlined_call_operand.vmem [shape: f32[1,256], index: 5, kind: input, shape index: {}]
  %s6 = inlined_call_operand.hbm [shape: bf16[256,256], index: 6, kind: input, shape index: {}]
  %s7 = inlined_call_operand.hbm [shape: f32[1,256], index: 7, kind: input, shape index: {}]
  %s8 = inlined_call_operand.hbm [shape: bf16[128,256], index: 8, kind: input, shape index: {}]
  %s9 = inlined_call_operand.vmem [shape: f32[1,256], index: 9, kind: input, shape index: {}]
  %s10 = inlined_call_operand.hbm [shape: bf16[256,512], index: 10, kind: input, shape index: {}]
  %s11 = inlined_call_operand.vmem [shape: f32[1,512], index: 11, kind: input, shape index: {}]
  %s12 = inlined_call_operand.hbm [shape: bf16[512,256], index: 12, kind: input, shape index: {}]
  %s13 = inlined_call_operand.vmem [shape: f32[1,256], index: 13, kind: input, shape index: {}]
  %s14 = inlined_call_operand.hbm [shape: f32[8,256], index: 14, kind: output, shape index: {0}]
  %s15 = inlined_call_operand.hbm [shape: f32[8,384], index: 15, kind: output, shape index: {1}]
  %16 = xla_tuple %s14, %s15
  %s17 = sld [smem:[#allocation0]]
  $region114: #{tpu_custom_call.1} parent=0
    _
  %s19 = ssub.s32 1, %s17
  %s20 = scalar_select 0, %s19, %s17
  $region1: #{tpu_custom_call.1} parent=0
    #allocation2 [shape = 'u8[8192]{0}', space=vmem, size = 0x2000, scoped, tag = 'input window, operand 0, single buffered']
    #allocation3 [shape = 's32[1]{0}', space=sflag, size = 0x4, scoped, tag = 'scoped memory for tpu_custom_call.1']
    #allocation4 [shape = 's32[1]{0}', space=sflag, size = 0x4, scoped, tag = 'scoped memory for tpu_custom_call.1']
    #allocation5 [shape = 'u8[4096]{0}', space=vmem, size = 0x1000, scoped, tag = 'input window, operand 1, single buffered']
    #allocation6 [shape = 's32[1]{0}', space=sflag, size = 0x4, scoped, tag = 'scoped memory for tpu_custom_call.1']
    #allocation7 [shape = 'u8[262144]{0}', space=vmem, size = 0x40000, scoped, tag = 'input window, operand 2, single buffered']
    #allocation8 [shape = 'u8[2048]{0}', space=vmem, size = 0x800, scoped, tag = 'input window, operand 3, single buffered']
    #allocation9 [shape = 's32[1]{0}', space=sflag, size = 0x4, scoped, tag = 'scoped memory for tpu_custom_call.1']
    #allocation10 [shape = 'u8[262144]{0}', space=vmem, size = 0x40000, scoped, tag = 'input window, operand 4, single buffered']
    #allocation11 [shape = 'u8[131072]{0}', space=vmem, size = 0x20000, scoped, tag = 'input window, operand 6, single buffered']
    #allocation12 [shape = 's32[1]{0}', space=sflag, size = 0x4, scoped, tag = 'scoped memory for tpu_custom_call.1']
    #allocation13 [shape = 'u8[1024]{0}', space=vmem, size = 0x400, scoped, tag = 'input window, operand 7, single buffered']
    #allocation14 [shape = 'u8[65536]{0}', space=vmem, size = 0x10000, scoped, tag = 'input window, operand 8, single buffered']
    #allocation15 [shape = 's32[1]{0}', space=sflag, size = 0x4, scoped, tag = 'scoped memory for tpu_custom_call.1']
    #allocation16 [shape = 'u8[262144]{0}', space=vmem, size = 0x40000, scoped, tag = 'input window, operand 10, single buffered']
    #allocation17 [shape = 'u8[262144]{0}', space=vmem, size = 0x40000, scoped, tag = 'input window, operand 12, single buffered']
    #allocation18 [shape = 's32[1]{0}', space=sflag, size = 0x4, scoped, tag = 'scoped memory for tpu_custom_call.1']
    #allocation19 [shape = 'u8[8192]{0}', space=vmem, size = 0x2000, scoped, tag = 'output window, operand 0, single buffered']
    #allocation20 [shape = 'u8[12288]{0}', space=vmem, size = 0x3000, scoped, tag = 'output window, operand 1, single buffered']
    #allocation21 [shape = 's32[1]{0}', space=sflag, size = 0x4, scoped, tag = 'scoped memory for tpu_custom_call.1']
    %21 = vsyncpa [#allocation3], 0
    %22 = vsyncpa [#allocation6], 0
    %23 = vsyncpa [#allocation9], 0
    %24 = vsyncpa [#allocation12], 0
    %25 = vsyncpa [#allocation15], 0
    %26 = vsyncpa [#allocation18], 0
    %27 = vsyncpa [#allocation4], 0
    %28 = vsyncpa [#allocation21], 0
    // Predicated region
    $region2: #{tpu_custom_call.1} parent=1 // pred_check
      _
    $region3: #{tpu_custom_call.1} parent=1 // pred_check_branch
      %30 = sbr.rel (0) target = $region5
    $region4: #{tpu_custom_call.1} parent=1 // pred_region
      %32 = vsyncadd [#allocation3], 0
      %s34 = sshll.u32 %s0, 4
      %s35 = int_to_ptr.hbm [resolvable:$true] %s34
      %s36 = sshll.u32 [#allocation2], 4
      %s37 = int_to_ptr.vmem [resolvable:$true] %s36
      %39 = dma.hbm_to_vmem [thread:$0]  %s35, 256, %s37, [#allocation3]
    $region5: #{tpu_custom_call.1} parent=1 // pred_fallthru
      _
    // Predicated region
    $region6: #{tpu_custom_call.1} parent=1 // pred_check
      _
    $region7: #{tpu_custom_call.1} parent=1 // pred_check_branch
      %41 = sbr.rel (0) target = $region9
    $region8: #{tpu_custom_call.1} parent=1 // pred_region
      %43 = vsyncadd [#allocation6], 0
      %s45 = sshll.u32 %s1, 4
      %s46 = int_to_ptr.hbm [resolvable:$true] %s45
      %s47 = sshll.u32 [#allocation5], 4
      %s48 = int_to_ptr.vmem [resolvable:$true] %s47
      %50 = dma.hbm_to_vmem [thread:$0]  %s46, 128, %s48, [#allocation6]
    $region9: #{tpu_custom_call.1} parent=1 // pred_fallthru
      _
    // Predicated region
    $region10: #{tpu_custom_call.1} parent=1 // pred_check
      _
    $region11: #{tpu_custom_call.1} parent=1 // pred_check_branch
      %52 = sbr.rel (0) target = $region13
    $region12: #{tpu_custom_call.1} parent=1 // pred_region
      %54 = vsyncadd [#allocation6], 0
      %s55 = sshll.u32 %s2, 4
      %s56 = int_to_ptr.hbm [resolvable:$true] %s55
      %s57 = sshll.u32 [#allocation7], 4
      %s58 = int_to_ptr.vmem [resolvable:$true] %s57
      %63 = dma.hbm_to_vmem [thread:$0]  %s56, 8192, %s58, [#allocation6], 256, 256, 16
    $region13: #{tpu_custom_call.1} parent=1 // pred_fallthru
      _
    // Predicated region
    $region14: #{tpu_custom_call.1} parent=1 // pred_check
      _
    $region15: #{tpu_custom_call.1} parent=1 // pred_check_branch
      %65 = sbr.rel (0) target = $region17
    $region16: #{tpu_custom_call.1} parent=1 // pred_region
      %67 = vsyncadd [#allocation9], 0
      %s69 = sshll.u32 %s3, 4
      %s70 = int_to_ptr.hbm [resolvable:$true] %s69
      %s71 = sshll.u32 [#allocation8], 4
      %s72 = int_to_ptr.vmem [resolvable:$true] %s71
      %74 = dma.hbm_to_vmem [thread:$0]  %s70, 64, %s72, [#allocation9]
    $region17: #{tpu_custom_call.1} parent=1 // pred_fallthru
      _
    // Predicated region
    $region18: #{tpu_custom_call.1} parent=1 // pred_check
      _
    $region19: #{tpu_custom_call.1} parent=1 // pred_check_branch
      %76 = sbr.rel (0) target = $region21
    $region20: #{tpu_custom_call.1} parent=1 // pred_region
      %78 = vsyncadd [#allocation9], 0
      %s79 = sshll.u32 %s4, 4
      %s80 = int_to_ptr.hbm [resolvable:$true] %s79
      %s81 = sshll.u32 [#allocation10], 4
      %s82 = int_to_ptr.vmem [resolvable:$true] %s81
      %87 = dma.hbm_to_vmem [thread:$0]  %s80, 8192, %s82, [#allocation9], 128, 128, 8
    $region21: #{tpu_custom_call.1} parent=1 // pred_fallthru
      _
    // Predicated region
    $region22: #{tpu_custom_call.1} parent=1 // pred_check
      _
    $region23: #{tpu_custom_call.1} parent=1 // pred_check_branch
      %89 = sbr.rel (0) target = $region25
    $region24: #{tpu_custom_call.1} parent=1 // pred_region
      _
    $region25: #{tpu_custom_call.1} parent=1 // pred_fallthru
      _
    // Predicated region
    $region26: #{tpu_custom_call.1} parent=1 // pred_check
      _
    $region27: #{tpu_custom_call.1} parent=1 // pred_check_branch
      %91 = sbr.rel (0) target = $region29
    $region28: #{tpu_custom_call.1} parent=1 // pred_region
      %93 = vsyncadd [#allocation12], 0
      %s94 = sshll.u32 %s6, 4
      %s95 = int_to_ptr.hbm [resolvable:$true] %s94
      %s96 = sshll.u32 [#allocation11], 4
      %s97 = int_to_ptr.vmem [resolvable:$true] %s96
      %102 = dma.hbm_to_vmem [thread:$0]  %s95, 4096, %s97, [#allocation12], 128, 128, 8
    $region29: #{tpu_custom_call.1} parent=1 // pred_fallthru
      _
    // Predicated region
    $region30: #{tpu_custom_call.1} parent=1 // pred_check
      _
    $region31: #{tpu_custom_call.1} parent=1 // pred_check_branch
      %104 = sbr.rel (0) target = $region33
    $region32: #{tpu_custom_call.1} parent=1 // pred_region
      %106 = vsyncadd [#allocation12], 0
      %s108 = sshll.u32 %s7, 4
      %s109 = int_to_ptr.hbm [resolvable:$true] %s108
      %s110 = sshll.u32 [#allocation13], 4
      %s111 = int_to_ptr.vmem [resolvable:$true] %s110
      %113 = dma.hbm_to_vmem [thread:$0]  %s109, 32, %s111, [#allocation12]
    $region33: #{tpu_custom_call.1} parent=1 // pred_fallthru
      _
    // Predicated region
    $region34: #{tpu_custom_call.1} parent=1 // pred_check
      _
    $region35: #{tpu_custom_call.1} parent=1 // pred_check_branch
      %115 = sbr.rel (0) target = $region37
    $region36: #{tpu_custom_call.1} parent=1 // pred_region
      %117 = vsyncadd [#allocation15], 0
      %s118 = sshll.u32 %s8, 4
      %s119 = int_to_ptr.hbm [resolvable:$true] %s118
      %s120 = sshll.u32 [#allocation14], 4
      %s121 = int_to_ptr.vmem [resolvable:$true] %s120
      %126 = dma.hbm_to_vmem [thread:$0]  %s119, 2048, %s121, [#allocation15], 128, 128, 8
    $region37: #{tpu_custom_call.1} parent=1 // pred_fallthru
      _
    // Predicated region
    $region38: #{tpu_custom_call.1} parent=1 // pred_check
      _
    $region39: #{tpu_custom_call.1} parent=1 // pred_check_branch
      %128 = sbr.rel (0) target = $region41
    $region40: #{tpu_custom_call.1} parent=1 // pred_region
      _
    $region41: #{tpu_custom_call.1} parent=1 // pred_fallthru
      _
    // Predicated region
    $region42: #{tpu_custom_call.1} parent=1 // pred_check
      _
    $region43: #{tpu_custom_call.1} parent=1 // pred_check_branch
      %130 = sbr.rel (0) target = $region45
    $region44: #{tpu_custom_call.1} parent=1 // pred_region
      %132 = vsyncadd [#allocation15], 0
      %s133 = sshll.u32 %s10, 4
      %s134 = int_to_ptr.hbm [resolvable:$true] %s133
      %s135 = sshll.u32 [#allocation16], 4
      %s136 = int_to_ptr.vmem [resolvable:$true] %s135
      %141 = dma.hbm_to_vmem [thread:$0]  %s134, 8192, %s136, [#allocation15], 256, 256, 16
    $region45: #{tpu_custom_call.1} parent=1 // pred_fallthru
      _
    // Predicated region
    $region46: #{tpu_custom_call.1} parent=1 // pred_check
      _
    $region47: #{tpu_custom_call.1} parent=1 // pred_check_branch
      %143 = sbr.rel (0) target = $region49
    $region48: #{tpu_custom_call.1} parent=1 // pred_region
      _
    $region49: #{tpu_custom_call.1} parent=1 // pred_fallthru
      _
    // Predicated region
    $region50: #{tpu_custom_call.1} parent=1 // pred_check
      _
    $region51: #{tpu_custom_call.1} parent=1 // pred_check_branch
      %145 = sbr.rel (0) target = $region53
    $region52: #{tpu_custom_call.1} parent=1 // pred_region
      %147 = vsyncadd [#allocation18], 0
      %s148 = sshll.u32 %s12, 4
      %s149 = int_to_ptr.hbm [resolvable:$true] %s148
      %s150 = sshll.u32 [#allocation17], 4
      %s151 = int_to_ptr.vmem [resolvable:$true] %s150
      %156 = dma.hbm_to_vmem [thread:$0]  %s149, 8192, %s151, [#allocation18], 128, 128, 8
    $region53: #{tpu_custom_call.1} parent=1 // pred_fallthru
      _
    // Predicated region
    $region54: #{tpu_custom_call.1} parent=1 // pred_check
      _
    $region55: #{tpu_custom_call.1} parent=1 // pred_check_branch
      %158 = sbr.rel (0) target = $region57
    $region56: #{tpu_custom_call.1} parent=1 // pred_region
      _
    $region57: #{tpu_custom_call.1} parent=1 // pred_fallthru
      _
    // Predicated region
    $region58: #{tpu_custom_call.1} parent=1 // pred_check
      _
    $region59: #{tpu_custom_call.1} parent=1 // pred_check_branch
      %160 = sbr.rel (0) target = $region61
    $region60: #{tpu_custom_call.1} parent=1 // pred_region
      %162 = dma.done [#allocation3], 256
    $region61: #{tpu_custom_call.1} parent=1 // pred_fallthru
      _
    // Predicated region
    $region62: #{tpu_custom_call.1} parent=1 // pred_check
      _
    $region63: #{tpu_custom_call.1} parent=1 // pred_check_branch
      %164 = sbr.rel (0) target = $region65
    $region64: #{tpu_custom_call.1} parent=1 // pred_region
      %166 = dma.done [#allocation6], 128
    $region65: #{tpu_custom_call.1} parent=1 // pred_fallthru
      _
    // Predicated region
    $region66: #{tpu_custom_call.1} parent=1 // pred_check
      _
    $region67: #{tpu_custom_call.1} parent=1 // pred_check_branch
      %168 = sbr.rel (0) target = $region69
    $region68: #{tpu_custom_call.1} parent=1 // pred_region
      %170 = dma.done [#allocation6], 8192
    $region69: #{tpu_custom_call.1} parent=1 // pred_fallthru
      _
    // Predicated region
    $region70: #{tpu_custom_call.1} parent=1 // pred_check
      _
    $region71: #{tpu_custom_call.1} parent=1 // pred_check_branch
      %172 = sbr.rel (0) target = $region73
    $region72: #{tpu_custom_call.1} parent=1 // pred_region
      %174 = dma.done [#allocation9], 64
    $region73: #{tpu_custom_call.1} parent=1 // pred_fallthru
      _
    // Predicated region
    $region74: #{tpu_custom_call.1} parent=1 // pred_check
      _
    $region75: #{tpu_custom_call.1} parent=1 // pred_check_branch
      %176 = sbr.rel (0) target = $region77
    $region76: #{tpu_custom_call.1} parent=1 // pred_region
      %178 = dma.done [#allocation9], 8192
    $region77: #{tpu_custom_call.1} parent=1 // pred_fallthru
      _
    // Predicated region
    $region78: #{tpu_custom_call.1} parent=1 // pred_check
      _
    $region79: #{tpu_custom_call.1} parent=1 // pred_check_branch
      %180 = sbr.rel (0) target = $region81
    $region80: #{tpu_custom_call.1} parent=1 // pred_region
      %182 = dma.done [#allocation12], 4096
    $region81: #{tpu_custom_call.1} parent=1 // pred_fallthru
      _
    // Predicated region
    $region82: #{tpu_custom_call.1} parent=1 // pred_check
      _
    $region83: #{tpu_custom_call.1} parent=1 // pred_check_branch
      %184 = sbr.rel (0) target = $region85
    $region84: #{tpu_custom_call.1} parent=1 // pred_region
      %186 = dma.done [#allocation12], 32
    $region85: #{tpu_custom_call.1} parent=1 // pred_fallthru
      _
    // Predicated region
    $region86: #{tpu_custom_call.1} parent=1 // pred_check
      _
    $region87: #{tpu_custom_call.1} parent=1 // pred_check_branch
      %188 = sbr.rel (0) target = $region89
    $region88: #{tpu_custom_call.1} parent=1 // pred_region
      %190 = dma.done [#allocation15], 2048
    $region89: #{tpu_custom_call.1} parent=1 // pred_fallthru
      _
    // Predicated region
    $region90: #{tpu_custom_call.1} parent=1 // pred_check
      _
    $region91: #{tpu_custom_call.1} parent=1 // pred_check_branch
      %192 = sbr.rel (0) target = $region93
    $region92: #{tpu_custom_call.1} parent=1 // pred_region
      %194 = dma.done [#allocation15], 8192
    $region93: #{tpu_custom_call.1} parent=1 // pred_fallthru
      _
    // Predicated region
    $region94: #{tpu_custom_call.1} parent=1 // pred_check
      _
    $region95: #{tpu_custom_call.1} parent=1 // pred_check_branch
      %196 = sbr.rel (0) target = $region97
    $region96: #{tpu_custom_call.1} parent=1 // pred_region
      %198 = dma.done [#allocation18], 8192
    $region97: #{tpu_custom_call.1} parent=1 // pred_fallthru
      _
    %v199 = vld [vmem:[#allocation2] sm:$0xff]
    %v200 = vld [vmem:[#allocation2 + $0x8] sm:$0xff]
    %v201 = vpack.c.bf16 %v199, %v199
    %v202 = vpack.c.bf16 %v200, %v200
    %v203 = vld [vmem:[#allocation7] sm:$0xff]
    %v204 = vld [vmem:[#allocation7 + $0x8] sm:$0xff]
    %v205 = vld [vmem:[#allocation7 + $0x10] sm:$0xff]
    %v206 = vld [vmem:[#allocation7 + $0x18] sm:$0xff]
    %v207 = vld [vmem:[#allocation7 + $0x20] sm:$0xff]
    %v208 = vld [vmem:[#allocation7 + $0x28] sm:$0xff]
    %v209 = vld [vmem:[#allocation7 + $0x30] sm:$0xff]
    %v210 = vld [vmem:[#allocation7 + $0x38] sm:$0xff]
    %v211 = vld [vmem:[#allocation7 + $0x40] sm:$0xff]
    %v212 = vld [vmem:[#allocation7 + $0x48] sm:$0xff]
    %v213 = vld [vmem:[#allocation7 + $0x50] sm:$0xff]
    %v214 = vld [vmem:[#allocation7 + $0x58] sm:$0xff]
    %v215 = vld [vmem:[#allocation7 + $0x60] sm:$0xff]
    %v216 = vld [vmem:[#allocation7 + $0x68] sm:$0xff]
    %v217 = vld [vmem:[#allocation7 + $0x70] sm:$0xff]
    %v218 = vld [vmem:[#allocation7 + $0x78] sm:$0xff]
    %v219 = vld [vmem:[#allocation7 + $0x80] sm:$0xff]
    %v220 = vld [vmem:[#allocation7 + $0x88] sm:$0xff]
    %v221 = vld [vmem:[#allocation7 + $0x90] sm:$0xff]
    %v222 = vld [vmem:[#allocation7 + $0x98] sm:$0xff]
    %v223 = vld [vmem:[#allocation7 + $0xa0] sm:$0xff]
    %v224 = vld [vmem:[#allocation7 + $0xa8] sm:$0xff]
    %v225 = vld [vmem:[#allocation7 + $0xb0] sm:$0xff]
    %v226 = vld [vmem:[#allocation7 + $0xb8] sm:$0xff]
    %v227 = vld [vmem:[#allocation7 + $0xc0] sm:$0xff]
    %v228 = vld [vmem:[#allocation7 + $0xc8] sm:$0xff]
    %v229 = vld [vmem:[#allocation7 + $0xd0] sm:$0xff]
    %v230 = vld [vmem:[#allocation7 + $0xd8] sm:$0xff]
    %v231 = vld [vmem:[#allocation7 + $0xe0] sm:$0xff]
    %v232 = vld [vmem:[#allocation7 + $0xe8] sm:$0xff]
    %v233 = vld [vmem:[#allocation7 + $0xf0] sm:$0xff]
    %v234 = vld [vmem:[#allocation7 + $0xf8] sm:$0xff]
    %v235 = vld [vmem:[#allocation7 + $0x100] sm:$0xff]
    %v236 = vld [vmem:[#allocation7 + $0x108] sm:$0xff]
    %v237 = vld [vmem:[#allocation7 + $0x110] sm:$0xff]
    %v238 = vld [vmem:[#allocation7 + $0x118] sm:$0xff]
    %v239 = vld [vmem:[#allocation7 + $0x120] sm:$0xff]
    %v240 = vld [vmem:[#allocation7 + $0x128] sm:$0xff]
    %v241 = vld [vmem:[#allocation7 + $0x130] sm:$0xff]
    %v242 = vld [vmem:[#allocation7 + $0x138] sm:$0xff]
    %v243 = vld [vmem:[#allocation7 + $0x140] sm:$0xff]
    %v244 = vld [vmem:[#allocation7 + $0x148] sm:$0xff]
    %v245 = vld [vmem:[#allocation7 + $0x150] sm:$0xff]
    %v246 = vld [vmem:[#allocation7 + $0x158] sm:$0xff]
    %v247 = vld [vmem:[#allocation7 + $0x160] sm:$0xff]
    %v248 = vld [vmem:[#allocation7 + $0x168] sm:$0xff]
    %v249 = vld [vmem:[#allocation7 + $0x170] sm:$0xff]
    %v250 = vld [vmem:[#allocation7 + $0x178] sm:$0xff]
    %v251 = vld [vmem:[#allocation7 + $0x180] sm:$0xff]
    %v252 = vld [vmem:[#allocation7 + $0x188] sm:$0xff]
    %v253 = vld [vmem:[#allocation7 + $0x190] sm:$0xff]
    %v254 = vld [vmem:[#allocation7 + $0x198] sm:$0xff]
    %v255 = vld [vmem:[#allocation7 + $0x1a0] sm:$0xff]
    %v256 = vld [vmem:[#allocation7 + $0x1a8] sm:$0xff]
    %v257 = vld [vmem:[#allocation7 + $0x1b0] sm:$0xff]
    %v258 = vld [vmem:[#allocation7 + $0x1b8] sm:$0xff]
    %v259 = vld [vmem:[#allocation7 + $0x1c0] sm:$0xff]
    %v260 = vld [vmem:[#allocation7 + $0x1c8] sm:$0xff]
    %v261 = vld [vmem:[#allocation7 + $0x1d0] sm:$0xff]
    %v262 = vld [vmem:[#allocation7 + $0x1d8] sm:$0xff]
    %v263 = vld [vmem:[#allocation7 + $0x1e0] sm:$0xff]
    %v264 = vld [vmem:[#allocation7 + $0x1e8] sm:$0xff]
    %v265 = vld [vmem:[#allocation7 + $0x1f0] sm:$0xff]
    %v266 = vld [vmem:[#allocation7 + $0x1f8] sm:$0xff]
    %v267 = vld [vmem:[#allocation8] sm:$0xf]
    %v269 = vperm.slane %v267, 0
    %v270 = vperm.slane %v267, 1
    %v271 = vperm.slane %v267, 2
    %v272 = vperm.slane %v267, 3
    %v341 = vunpack.c.l.b16 %v203
    %v342 = vunpack.c.h.b16 %v203
    %v343 = vunpack.c.l.b16 %v204
    %v344 = vunpack.c.h.b16 %v204
    %v345 = vunpack.c.l.b16 %v205
    %v346 = vunpack.c.h.b16 %v205
    %v347 = vunpack.c.l.b16 %v206
    %v348 = vunpack.c.h.b16 %v206
    %v349 = vunpack.c.l.b16 %v207
    %v350 = vunpack.c.h.b16 %v207
    %v351 = vunpack.c.l.b16 %v208
    %v352 = vunpack.c.h.b16 %v208
    %v353 = vunpack.c.l.b16 %v209
    %v354 = vunpack.c.h.b16 %v209
    %v355 = vunpack.c.l.b16 %v210
    %v356 = vunpack.c.h.b16 %v210
    %v357 = vunpack.c.l.b16 %v211
    %v358 = vunpack.c.h.b16 %v211
    %v359 = vunpack.c.l.b16 %v212
    %v360 = vunpack.c.h.b16 %v212
    %v361 = vunpack.c.l.b16 %v213
    %v362 = vunpack.c.h.b16 %v213
    %v363 = vunpack.c.l.b16 %v214
    %v364 = vunpack.c.h.b16 %v214
    %v365 = vunpack.c.l.b16 %v215
    %v366 = vunpack.c.h.b16 %v215
    %v367 = vunpack.c.l.b16 %v216
    %v368 = vunpack.c.h.b16 %v216
    %v369 = vunpack.c.l.b16 %v217
    %v370 = vunpack.c.h.b16 %v217
    %v371 = vunpack.c.l.b16 %v218
    %v372 = vunpack.c.h.b16 %v218
    %v373 = vunpack.c.l.b16 %v219
    %v374 = vunpack.c.h.b16 %v219
    %v375 = vunpack.c.l.b16 %v220
    %v376 = vunpack.c.h.b16 %v220
    %v377 = vunpack.c.l.b16 %v221
    %v378 = vunpack.c.h.b16 %v221
    %v379 = vunpack.c.l.b16 %v222
    %v380 = vunpack.c.h.b16 %v222
    %v381 = vunpack.c.l.b16 %v223
    %v382 = vunpack.c.h.b16 %v223
    %v383 = vunpack.c.l.b16 %v224
    %v384 = vunpack.c.h.b16 %v224
    %v385 = vunpack.c.l.b16 %v225
    %v386 = vunpack.c.h.b16 %v225
    %v387 = vunpack.c.l.b16 %v226
    %v388 = vunpack.c.h.b16 %v226
    %v389 = vunpack.c.l.b16 %v227
    %v390 = vunpack.c.h.b16 %v227
    %v391 = vunpack.c.l.b16 %v228
    %v392 = vunpack.c.h.b16 %v228
    %v393 = vunpack.c.l.b16 %v229
    %v394 = vunpack.c.h.b16 %v229
    %v395 = vunpack.c.l.b16 %v230
    %v396 = vunpack.c.h.b16 %v230
    %v397 = vunpack.c.l.b16 %v231
    %v398 = vunpack.c.h.b16 %v231
    %v399 = vunpack.c.l.b16 %v232
    %v400 = vunpack.c.h.b16 %v232
    %v401 = vunpack.c.l.b16 %v233
    %v402 = vunpack.c.h.b16 %v233
    %v403 = vunpack.c.l.b16 %v234
    %v404 = vunpack.c.h.b16 %v234
    %v405 = vunpack.c.l.b16 %v235
    %v406 = vunpack.c.h.b16 %v235
    %v407 = vunpack.c.l.b16 %v236
    %v408 = vunpack.c.h.b16 %v236
    %v409 = vunpack.c.l.b16 %v237
    %v410 = vunpack.c.h.b16 %v237
    %v411 = vunpack.c.l.b16 %v238
    %v412 = vunpack.c.h.b16 %v238
    %v413 = vunpack.c.l.b16 %v239
    %v414 = vunpack.c.h.b16 %v239
    %v415 = vunpack.c.l.b16 %v240
    %v416 = vunpack.c.h.b16 %v240
    %v417 = vunpack.c.l.b16 %v241
    %v418 = vunpack.c.h.b16 %v241
    %v419 = vunpack.c.l.b16 %v242
    %v420 = vunpack.c.h.b16 %v242
    %v421 = vunpack.c.l.b16 %v243
    %v422 = vunpack.c.h.b16 %v243
    %v423 = vunpack.c.l.b16 %v244
    %v424 = vunpack.c.h.b16 %v244
    %v425 = vunpack.c.l.b16 %v245
    %v426 = vunpack.c.h.b16 %v245
    %v427 = vunpack.c.l.b16 %v246
    %v428 = vunpack.c.h.b16 %v246
    %v429 = vunpack.c.l.b16 %v247
    %v430 = vunpack.c.h.b16 %v247
    %v431 = vunpack.c.l.b16 %v248
    %v432 = vunpack.c.h.b16 %v248
    %v433 = vunpack.c.l.b16 %v249
    %v434 = vunpack.c.h.b16 %v249
    %v435 = vunpack.c.l.b16 %v250
    %v436 = vunpack.c.h.b16 %v250
    %v437 = vunpack.c.l.b16 %v251
    %v438 = vunpack.c.h.b16 %v251
    %v439 = vunpack.c.l.b16 %v252
    %v440 = vunpack.c.h.b16 %v252
    %v441 = vunpack.c.l.b16 %v253
    %v442 = vunpack.c.h.b16 %v253
    %v443 = vunpack.c.l.b16 %v254
    %v444 = vunpack.c.h.b16 %v254
    %v445 = vunpack.c.l.b16 %v255
    %v446 = vunpack.c.h.b16 %v255
    %v447 = vunpack.c.l.b16 %v256
    %v448 = vunpack.c.h.b16 %v256
    %v449 = vunpack.c.l.b16 %v257
    %v450 = vunpack.c.h.b16 %v257
    %v451 = vunpack.c.l.b16 %v258
    %v452 = vunpack.c.h.b16 %v258
    %v453 = vunpack.c.l.b16 %v259
    %v454 = vunpack.c.h.b16 %v259
    %v455 = vunpack.c.l.b16 %v260
    %v456 = vunpack.c.h.b16 %v260
    %v457 = vunpack.c.l.b16 %v261
    %v458 = vunpack.c.h.b16 %v261
    %v459 = vunpack.c.l.b16 %v262
    %v460 = vunpack.c.h.b16 %v262
    %v461 = vunpack.c.l.b16 %v263
    %v462 = vunpack.c.h.b16 %v263
    %v463 = vunpack.c.l.b16 %v264
    %v464 = vunpack.c.h.b16 %v264
    %v465 = vunpack.c.l.b16 %v265
    %v466 = vunpack.c.h.b16 %v265
    %v467 = vunpack.c.l.b16 %v266
    %v468 = vunpack.c.h.b16 %v266
    %v469 = vpack.c.b16 %v345, %v341
    %v470 = vpack.c.b16 %v346, %v342
    %v471 = vpack.c.b16 %v347, %v343
    %v472 = vpack.c.b16 %v348, %v344
    %v473 = vpack.c.b16 %v353, %v349
    %v474 = vpack.c.b16 %v354, %v350
    %v475 = vpack.c.b16 %v355, %v351
    %v476 = vpack.c.b16 %v356, %v352
    %v477 = vpack.c.b16 %v361, %v357
    %v478 = vpack.c.b16 %v362, %v358
    %v479 = vpack.c.b16 %v363, %v359
    %v480 = vpack.c.b16 %v364, %v360
    %v481 = vpack.c.b16 %v369, %v365
    %v482 = vpack.c.b16 %v370, %v366
    %v483 = vpack.c.b16 %v371, %v367
    %v484 = vpack.c.b16 %v372, %v368
    %v485 = vpack.c.b16 %v377, %v373
    %v486 = vpack.c.b16 %v378, %v374
    %v487 = vpack.c.b16 %v379, %v375
    %v488 = vpack.c.b16 %v380, %v376
    %v489 = vpack.c.b16 %v385, %v381
    %v490 = vpack.c.b16 %v386, %v382
    %v491 = vpack.c.b16 %v387, %v383
    %v492 = vpack.c.b16 %v388, %v384
    %v493 = vpack.c.b16 %v393, %v389
    %v494 = vpack.c.b16 %v394, %v390
    %v495 = vpack.c.b16 %v395, %v391
    %v496 = vpack.c.b16 %v396, %v392
    %v497 = vpack.c.b16 %v401, %v397
    %v498 = vpack.c.b16 %v402, %v398
    %v499 = vpack.c.b16 %v403, %v399
    %v500 = vpack.c.b16 %v404, %v400
    %v501 = vpack.c.b16 %v409, %v405
    %v502 = vpack.c.b16 %v410, %v406
    %v503 = vpack.c.b16 %v411, %v407
    %v504 = vpack.c.b16 %v412, %v408
    %v505 = vpack.c.b16 %v417, %v413
    %v506 = vpack.c.b16 %v418, %v414
    %v507 = vpack.c.b16 %v419, %v415
    %v508 = vpack.c.b16 %v420, %v416
    %v509 = vpack.c.b16 %v425, %v421
    %v510 = vpack.c.b16 %v426, %v422
    %v511 = vpack.c.b16 %v427, %v423
    %v512 = vpack.c.b16 %v428, %v424
    %v513 = vpack.c.b16 %v433, %v429
    %v514 = vpack.c.b16 %v434, %v430
    %v515 = vpack.c.b16 %v435, %v431
    %v516 = vpack.c.b16 %v436, %v432
    %v517 = vpack.c.b16 %v441, %v437
    %v518 = vpack.c.b16 %v442, %v438
    %v519 = vpack.c.b16 %v443, %v439
    %v520 = vpack.c.b16 %v444, %v440
    %v521 = vpack.c.b16 %v449, %v445
    %v522 = vpack.c.b16 %v450, %v446
    %v523 = vpack.c.b16 %v451, %v447
    %v524 = vpack.c.b16 %v452, %v448
    %v525 = vpack.c.b16 %v457, %v453
    %v526 = vpack.c.b16 %v458, %v454
    %v527 = vpack.c.b16 %v459, %v455
    %v528 = vpack.c.b16 %v460, %v456
    %v529 = vpack.c.b16 %v465, %v461
    %v530 = vpack.c.b16 %v466, %v462
    %v531 = vpack.c.b16 %v467, %v463
    %v532 = vpack.c.b16 %v468, %v464
    %597 = vmatpush.bf16.msra.mxu0 %v497
    %598 = vmatpush.bf16.msra.mxu0 %v493
    %599 = vmatpush.bf16.msra.mxu0 %v489
    %600 = vmatpush.bf16.msra.mxu0 %v485
    %601 = vmatpush.bf16.msra.mxu0 %v481
    %602 = vmatpush.bf16.msra.mxu0 %v477
    %603 = vmatpush.bf16.msra.mxu0 %v473
    %604 = vmatpush.bf16.msra.mxu0 %v469
    %605 = vmatmul.bf16.gmra.mxu0 %v201
    %v606 = vpop.f32.mrf.mxu0
    %v607 = vadd.f32 %v269, %v606
    %v608 = vpop.f32.mrf.mxu0
    %609 = vdwg.mxu0
    %610 = vmatpush.bf16.msra.mxu0 %v529
    %611 = vmatpush.bf16.msra.mxu0 %v525
    %612 = vmatpush.bf16.msra.mxu0 %v521
    %613 = vmatpush.bf16.msra.mxu0 %v517
    %614 = vmatpush.bf16.msra.mxu0 %v513
    %615 = vmatpush.bf16.msra.mxu0 %v509
    %616 = vmatpush.bf16.msra.mxu0 %v505
    %617 = vmatpush.bf16.msra.mxu0 %v501
    %618 = vmatmul.bf16.gmra.mxu0 %v202
    %v619 = vpop.f32.mrf.mxu0
    %v620 = vadd.f32 %v607, %v619
    %v621 = vpop.f32.mrf.mxu0
    %622 = vdwg.mxu0
    %623 = vmatpush.bf16.msra.mxu0 %v498
    %624 = vmatpush.bf16.msra.mxu0 %v494
    %625 = vmatpush.bf16.msra.mxu0 %v490
    %626 = vmatpush.bf16.msra.mxu0 %v486
    %627 = vmatpush.bf16.msra.mxu0 %v482
    %628 = vmatpush.bf16.msra.mxu0 %v478
    %629 = vmatpush.bf16.msra.mxu0 %v474
    %630 = vmatpush.bf16.msra.mxu0 %v470
    %631 = vmatmul.bf16.gmra.mxu0 %v201
    %v632 = vpop.f32.mrf.mxu0
    %v633 = vadd.f32 %v270, %v632
    %v634 = vpop.f32.mrf.mxu0
    %635 = vdwg.mxu0
    %636 = vmatpush.bf16.msra.mxu0 %v530
    %637 = vmatpush.bf16.msra.mxu0 %v526
    %638 = vmatpush.bf16.msra.mxu0 %v522
    %639 = vmatpush.bf16.msra.mxu0 %v518
    %640 = vmatpush.bf16.msra.mxu0 %v514
    %641 = vmatpush.bf16.msra.mxu0 %v510
    %642 = vmatpush.bf16.msra.mxu0 %v506
    %643 = vmatpush.bf16.msra.mxu0 %v502
    %644 = vmatmul.bf16.gmra.mxu0 %v202
    %v645 = vpop.f32.mrf.mxu0
    %v646 = vadd.f32 %v633, %v645
    %v647 = vpop.f32.mrf.mxu0
    %648 = vdwg.mxu0
    %649 = vmatpush.bf16.msra.mxu0 %v499
    %650 = vmatpush.bf16.msra.mxu0 %v495
    %651 = vmatpush.bf16.msra.mxu0 %v491
    %652 = vmatpush.bf16.msra.mxu0 %v487
    %653 = vmatpush.bf16.msra.mxu0 %v483
    %654 = vmatpush.bf16.msra.mxu0 %v479
    %655 = vmatpush.bf16.msra.mxu0 %v475
    %656 = vmatpush.bf16.msra.mxu0 %v471
    %657 = vmatmul.bf16.gmra.mxu0 %v201
    %v658 = vpop.f32.mrf.mxu0
    %v659 = vadd.f32 %v271, %v658
    %v660 = vpop.f32.mrf.mxu0
    %661 = vdwg.mxu0
    %662 = vmatpush.bf16.msra.mxu0 %v531
    %663 = vmatpush.bf16.msra.mxu0 %v527
    %664 = vmatpush.bf16.msra.mxu0 %v523
    %665 = vmatpush.bf16.msra.mxu0 %v519
    %666 = vmatpush.bf16.msra.mxu0 %v515
    %667 = vmatpush.bf16.msra.mxu0 %v511
    %668 = vmatpush.bf16.msra.mxu0 %v507
    %669 = vmatpush.bf16.msra.mxu0 %v503
    %670 = vmatmul.bf16.gmra.mxu0 %v202
    %v671 = vpop.f32.mrf.mxu0
    %v672 = vadd.f32 %v659, %v671
    %v673 = vpop.f32.mrf.mxu0
    %674 = vdwg.mxu0
    %675 = vmatpush.bf16.msra.mxu0 %v500
    %676 = vmatpush.bf16.msra.mxu0 %v496
    %677 = vmatpush.bf16.msra.mxu0 %v492
    %678 = vmatpush.bf16.msra.mxu0 %v488
    %679 = vmatpush.bf16.msra.mxu0 %v484
    %680 = vmatpush.bf16.msra.mxu0 %v480
    %681 = vmatpush.bf16.msra.mxu0 %v476
    %682 = vmatpush.bf16.msra.mxu0 %v472
    %683 = vmatmul.bf16.gmra.mxu0 %v201
    %v684 = vpop.f32.mrf.mxu0
    %v685 = vadd.f32 %v272, %v684
    %v686 = vpop.f32.mrf.mxu0
    %687 = vdwg.mxu0
    %688 = vmatpush.bf16.msra.mxu0 %v532
    %689 = vmatpush.bf16.msra.mxu0 %v528
    %690 = vmatpush.bf16.msra.mxu0 %v524
    %691 = vmatpush.bf16.msra.mxu0 %v520
    %692 = vmatpush.bf16.msra.mxu0 %v516
    %693 = vmatpush.bf16.msra.mxu0 %v512
    %694 = vmatpush.bf16.msra.mxu0 %v508
    %695 = vmatpush.bf16.msra.mxu0 %v504
    %696 = vmatmul.bf16.gmra.mxu0 %v202
    %v697 = vpop.f32.mrf.mxu0
    %v698 = vadd.f32 %v685, %v697
    %v699 = vpop.f32.mrf.mxu0
    %700 = vdwg.mxu0
    %vm701 = vcmp.gt.f32.partialorder %v620, 0.0
    %vm702 = vcmp.gt.f32.partialorder %v646, 0.0
    %vm703 = vcmp.gt.f32.partialorder %v672, 0.0
    %vm704 = vcmp.gt.f32.partialorder %v698, 0.0
    %v705 = vmul.f32 %v620, 0.2
    %v706 = vmul.f32 %v646, 0.2
    %v707 = vmul.f32 %v672, 0.2
    %v708 = vmul.f32 %v698, 0.2
    %v709 = vsel %vm701, %v620, %v705
    %v710 = vsel %vm702, %v646, %v706
    %v711 = vsel %vm703, %v672, %v707
    %v712 = vsel %vm704, %v698, %v708
    %v713 = vpack.c.bf16 %v709, %v709
    %v714 = vpack.c.bf16 %v710, %v710
    %v715 = vpack.c.bf16 %v711, %v711
    %v716 = vpack.c.bf16 %v712, %v712
    %v717 = vld [vmem:[#allocation10] sm:$0xff]
    %v718 = vld [vmem:[#allocation10 + $0x8] sm:$0xff]
    %v719 = vld [vmem:[#allocation10 + $0x10] sm:$0xff]
    %v720 = vld [vmem:[#allocation10 + $0x18] sm:$0xff]
    %v721 = vld [vmem:[#allocation10 + $0x20] sm:$0xff]
    %v722 = vld [vmem:[#allocation10 + $0x28] sm:$0xff]
    %v723 = vld [vmem:[#allocation10 + $0x30] sm:$0xff]
    %v724 = vld [vmem:[#allocation10 + $0x38] sm:$0xff]
    %v725 = vld [vmem:[#allocation10 + $0x40] sm:$0xff]
    %v726 = vld [vmem:[#allocation10 + $0x48] sm:$0xff]
    %v727 = vld [vmem:[#allocation10 + $0x50] sm:$0xff]
    %v728 = vld [vmem:[#allocation10 + $0x58] sm:$0xff]
    %v729 = vld [vmem:[#allocation10 + $0x60] sm:$0xff]
    %v730 = vld [vmem:[#allocation10 + $0x68] sm:$0xff]
    %v731 = vld [vmem:[#allocation10 + $0x70] sm:$0xff]
    %v732 = vld [vmem:[#allocation10 + $0x78] sm:$0xff]
    %v733 = vld [vmem:[#allocation10 + $0x80] sm:$0xff]
    %v734 = vld [vmem:[#allocation10 + $0x88] sm:$0xff]
    %v735 = vld [vmem:[#allocation10 + $0x90] sm:$0xff]
    %v736 = vld [vmem:[#allocation10 + $0x98] sm:$0xff]
    %v737 = vld [vmem:[#allocation10 + $0xa0] sm:$0xff]
    %v738 = vld [vmem:[#allocation10 + $0xa8] sm:$0xff]
    %v739 = vld [vmem:[#allocation10 + $0xb0] sm:$0xff]
    %v740 = vld [vmem:[#allocation10 + $0xb8] sm:$0xff]
    %v741 = vld [vmem:[#allocation10 + $0xc0] sm:$0xff]
    %v742 = vld [vmem:[#allocation10 + $0xc8] sm:$0xff]
    %v743 = vld [vmem:[#allocation10 + $0xd0] sm:$0xff]
    %v744 = vld [vmem:[#allocation10 + $0xd8] sm:$0xff]
    %v745 = vld [vmem:[#allocation10 + $0xe0] sm:$0xff]
    %v746 = vld [vmem:[#allocation10 + $0xe8] sm:$0xff]
    %v747 = vld [vmem:[#allocation10 + $0xf0] sm:$0xff]
    %v748 = vld [vmem:[#allocation10 + $0xf8] sm:$0xff]
    %v749 = vld [vmem:[#allocation10 + $0x100] sm:$0xff]
    %v750 = vld [vmem:[#allocation10 + $0x108] sm:$0xff]
    %v751 = vld [vmem:[#allocation10 + $0x110] sm:$0xff]
    %v752 = vld [vmem:[#allocation10 + $0x118] sm:$0xff]
    %v753 = vld [vmem:[#allocation10 + $0x120] sm:$0xff]
    %v754 = vld [vmem:[#allocation10 + $0x128] sm:$0xff]
    %v755 = vld [vmem:[#allocation10 + $0x130] sm:$0xff]
    %v756 = vld [vmem:[#allocation10 + $0x138] sm:$0xff]
    %v757 = vld [vmem:[#allocation10 + $0x140] sm:$0xff]
    %v758 = vld [vmem:[#allocation10 + $0x148] sm:$0xff]
    %v759 = vld [vmem:[#allocation10 + $0x150] sm:$0xff]
    %v760 = vld [vmem:[#allocation10 + $0x158] sm:$0xff]
    %v761 = vld [vmem:[#allocation10 + $0x160] sm:$0xff]
    %v762 = vld [vmem:[#allocation10 + $0x168] sm:$0xff]
    %v763 = vld [vmem:[#allocation10 + $0x170] sm:$0xff]
    %v764 = vld [vmem:[#allocation10 + $0x178] sm:$0xff]
    %v765 = vld [vmem:[#allocation10 + $0x180] sm:$0xff]
    %v766 = vld [vmem:[#allocation10 + $0x188] sm:$0xff]
    %v767 = vld [vmem:[#allocation10 + $0x190] sm:$0xff]
    %v768 = vld [vmem:[#allocation10 + $0x198] sm:$0xff]
    %v769 = vld [vmem:[#allocation10 + $0x1a0] sm:$0xff]
    %v770 = vld [vmem:[#allocation10 + $0x1a8] sm:$0xff]
    %v771 = vld [vmem:[#allocation10 + $0x1b0] sm:$0xff]
    %v772 = vld [vmem:[#allocation10 + $0x1b8] sm:$0xff]
    %v773 = vld [vmem:[#allocation10 + $0x1c0] sm:$0xff]
    %v774 = vld [vmem:[#allocation10 + $0x1c8] sm:$0xff]
    %v775 = vld [vmem:[#allocation10 + $0x1d0] sm:$0xff]
    %v776 = vld [vmem:[#allocation10 + $0x1d8] sm:$0xff]
    %v777 = vld [vmem:[#allocation10 + $0x1e0] sm:$0xff]
    %v778 = vld [vmem:[#allocation10 + $0x1e8] sm:$0xff]
    %v779 = vld [vmem:[#allocation10 + $0x1f0] sm:$0xff]
    %v780 = vld [vmem:[#allocation10 + $0x1f8] sm:$0xff]
    %v781 = vld [vmem:[%s5] sm:$0x3]
    %v783 = vperm.slane %v781, 0
    %v784 = vperm.slane %v781, 1
    %v851 = vunpack.c.l.b16 %v717
    %v852 = vunpack.c.h.b16 %v717
    %v853 = vunpack.c.l.b16 %v718
    %v854 = vunpack.c.h.b16 %v718
    %v855 = vunpack.c.l.b16 %v719
    %v856 = vunpack.c.h.b16 %v719
    %v857 = vunpack.c.l.b16 %v720
    %v858 = vunpack.c.h.b16 %v720
    %v859 = vunpack.c.l.b16 %v721
    %v860 = vunpack.c.h.b16 %v721
    %v861 = vunpack.c.l.b16 %v722
    %v862 = vunpack.c.h.b16 %v722
    %v863 = vunpack.c.l.b16 %v723
    %v864 = vunpack.c.h.b16 %v723
    %v865 = vunpack.c.l.b16 %v724
    %v866 = vunpack.c.h.b16 %v724
    %v867 = vunpack.c.l.b16 %v725
    %v868 = vunpack.c.h.b16 %v725
    %v869 = vunpack.c.l.b16 %v726
    %v870 = vunpack.c.h.b16 %v726
    %v871 = vunpack.c.l.b16 %v727
    %v872 = vunpack.c.h.b16 %v727
    %v873 = vunpack.c.l.b16 %v728
    %v874 = vunpack.c.h.b16 %v728
    %v875 = vunpack.c.l.b16 %v729
    %v876 = vunpack.c.h.b16 %v729
    %v877 = vunpack.c.l.b16 %v730
    %v878 = vunpack.c.h.b16 %v730
    %v879 = vunpack.c.l.b16 %v731
    %v880 = vunpack.c.h.b16 %v731
    %v881 = vunpack.c.l.b16 %v732
    %v882 = vunpack.c.h.b16 %v732
    %v883 = vunpack.c.l.b16 %v733
    %v884 = vunpack.c.h.b16 %v733
    %v885 = vunpack.c.l.b16 %v734
    %v886 = vunpack.c.h.b16 %v734
    %v887 = vunpack.c.l.b16 %v735
    %v888 = vunpack.c.h.b16 %v735
    %v889 = vunpack.c.l.b16 %v736
    %v890 = vunpack.c.h.b16 %v736
    %v891 = vunpack.c.l.b16 %v737
    %v892 = vunpack.c.h.b16 %v737
    %v893 = vunpack.c.l.b16 %v738
    %v894 = vunpack.c.h.b16 %v738
    %v895 = vunpack.c.l.b16 %v739
    %v896 = vunpack.c.h.b16 %v739
    %v897 = vunpack.c.l.b16 %v740
    %v898 = vunpack.c.h.b16 %v740
    %v899 = vunpack.c.l.b16 %v741
    %v900 = vunpack.c.h.b16 %v741
    %v901 = vunpack.c.l.b16 %v742
    %v902 = vunpack.c.h.b16 %v742
    %v903 = vunpack.c.l.b16 %v743
    %v904 = vunpack.c.h.b16 %v743
    %v905 = vunpack.c.l.b16 %v744
    %v906 = vunpack.c.h.b16 %v744
    %v907 = vunpack.c.l.b16 %v745
    %v908 = vunpack.c.h.b16 %v745
    %v909 = vunpack.c.l.b16 %v746
    %v910 = vunpack.c.h.b16 %v746
    %v911 = vunpack.c.l.b16 %v747
    %v912 = vunpack.c.h.b16 %v747
    %v913 = vunpack.c.l.b16 %v748
    %v914 = vunpack.c.h.b16 %v748
    %v915 = vunpack.c.l.b16 %v749
    %v916 = vunpack.c.h.b16 %v749
    %v917 = vunpack.c.l.b16 %v750
    %v918 = vunpack.c.h.b16 %v750
    %v919 = vunpack.c.l.b16 %v751
    %v920 = vunpack.c.h.b16 %v751
    %v921 = vunpack.c.l.b16 %v752
    %v922 = vunpack.c.h.b16 %v752
    %v923 = vunpack.c.l.b16 %v753
    %v924 = vunpack.c.h.b16 %v753
    %v925 = vunpack.c.l.b16 %v754
    %v926 = vunpack.c.h.b16 %v754
    %v927 = vunpack.c.l.b16 %v755
    %v928 = vunpack.c.h.b16 %v755
    %v929 = vunpack.c.l.b16 %v756
    %v930 = vunpack.c.h.b16 %v756
    %v931 = vunpack.c.l.b16 %v757
    %v932 = vunpack.c.h.b16 %v757
    %v933 = vunpack.c.l.b16 %v758
    %v934 = vunpack.c.h.b16 %v758
    %v935 = vunpack.c.l.b16 %v759
    %v936 = vunpack.c.h.b16 %v759
    %v937 = vunpack.c.l.b16 %v760
    %v938 = vunpack.c.h.b16 %v760
    %v939 = vunpack.c.l.b16 %v761
    %v940 = vunpack.c.h.b16 %v761
    %v941 = vunpack.c.l.b16 %v762
    %v942 = vunpack.c.h.b16 %v762
    %v943 = vunpack.c.l.b16 %v763
    %v944 = vunpack.c.h.b16 %v763
    %v945 = vunpack.c.l.b16 %v764
    %v946 = vunpack.c.h.b16 %v764
    %v947 = vunpack.c.l.b16 %v765
    %v948 = vunpack.c.h.b16 %v765
    %v949 = vunpack.c.l.b16 %v766
    %v950 = vunpack.c.h.b16 %v766
    %v951 = vunpack.c.l.b16 %v767
    %v952 = vunpack.c.h.b16 %v767
    %v953 = vunpack.c.l.b16 %v768
    %v954 = vunpack.c.h.b16 %v768
    %v955 = vunpack.c.l.b16 %v769
    %v956 = vunpack.c.h.b16 %v769
    %v957 = vunpack.c.l.b16 %v770
    %v958 = vunpack.c.h.b16 %v770
    %v959 = vunpack.c.l.b16 %v771
    %v960 = vunpack.c.h.b16 %v771
    %v961 = vunpack.c.l.b16 %v772
    %v962 = vunpack.c.h.b16 %v772
    %v963 = vunpack.c.l.b16 %v773
    %v964 = vunpack.c.h.b16 %v773
    %v965 = vunpack.c.l.b16 %v774
    %v966 = vunpack.c.h.b16 %v774
    %v967 = vunpack.c.l.b16 %v775
    %v968 = vunpack.c.h.b16 %v775
    %v969 = vunpack.c.l.b16 %v776
    %v970 = vunpack.c.h.b16 %v776
    %v971 = vunpack.c.l.b16 %v777
    %v972 = vunpack.c.h.b16 %v777
    %v973 = vunpack.c.l.b16 %v778
    %v974 = vunpack.c.h.b16 %v778
    %v975 = vunpack.c.l.b16 %v779
    %v976 = vunpack.c.h.b16 %v779
    %v977 = vunpack.c.l.b16 %v780
    %v978 = vunpack.c.h.b16 %v780
    %v979 = vpack.c.b16 %v853, %v851
    %v980 = vpack.c.b16 %v854, %v852
    %v981 = vpack.c.b16 %v857, %v855
    %v982 = vpack.c.b16 %v858, %v856
    %v983 = vpack.c.b16 %v861, %v859
    %v984 = vpack.c.b16 %v862, %v860
    %v985 = vpack.c.b16 %v865, %v863
    %v986 = vpack.c.b16 %v866, %v864
    %v987 = vpack.c.b16 %v869, %v867
    %v988 = vpack.c.b16 %v870, %v868
    %v989 = vpack.c.b16 %v873, %v871
    %v990 = vpack.c.b16 %v874, %v872
    %v991 = vpack.c.b16 %v877, %v875
    %v992 = vpack.c.b16 %v878, %v876
    %v993 = vpack.c.b16 %v881, %v879
    %v994 = vpack.c.b16 %v882, %v880
    %v995 = vpack.c.b16 %v885, %v883
    %v996 = vpack.c.b16 %v886, %v884
    %v997 = vpack.c.b16 %v889, %v887
    %v998 = vpack.c.b16 %v890, %v888
    %v999 = vpack.c.b16 %v893, %v891
    %v1000 = vpack.c.b16 %v894, %v892
    %v1001 = vpack.c.b16 %v897, %v895
    %v1002 = vpack.c.b16 %v898, %v896
    %v1003 = vpack.c.b16 %v901, %v899
    %v1004 = vpack.c.b16 %v902, %v900
    %v1005 = vpack.c.b16 %v905, %v903
    %v1006 = vpack.c.b16 %v906, %v904
    %v1007 = vpack.c.b16 %v909, %v907
    %v1008 = vpack.c.b16 %v910, %v908
    %v1009 = vpack.c.b16 %v913, %v911
    %v1010 = vpack.c.b16 %v914, %v912
    %v1011 = vpack.c.b16 %v917, %v915
    %v1012 = vpack.c.b16 %v918, %v916
    %v1013 = vpack.c.b16 %v921, %v919
    %v1014 = vpack.c.b16 %v922, %v920
    %v1015 = vpack.c.b16 %v925, %v923
    %v1016 = vpack.c.b16 %v926, %v924
    %v1017 = vpack.c.b16 %v929, %v927
    %v1018 = vpack.c.b16 %v930, %v928
    %v1019 = vpack.c.b16 %v933, %v931
    %v1020 = vpack.c.b16 %v934, %v932
    %v1021 = vpack.c.b16 %v937, %v935
    %v1022 = vpack.c.b16 %v938, %v936
    %v1023 = vpack.c.b16 %v941, %v939
    %v1024 = vpack.c.b16 %v942, %v940
    %v1025 = vpack.c.b16 %v945, %v943
    %v1026 = vpack.c.b16 %v946, %v944
    %v1027 = vpack.c.b16 %v949, %v947
    %v1028 = vpack.c.b16 %v950, %v948
    %v1029 = vpack.c.b16 %v953, %v951
    %v1030 = vpack.c.b16 %v954, %v952
    %v1031 = vpack.c.b16 %v957, %v955
    %v1032 = vpack.c.b16 %v958, %v956
    %v1033 = vpack.c.b16 %v961, %v959
    %v1034 = vpack.c.b16 %v962, %v960
    %v1035 = vpack.c.b16 %v965, %v963
    %v1036 = vpack.c.b16 %v966, %v964
    %v1037 = vpack.c.b16 %v969, %v967
    %v1038 = vpack.c.b16 %v970, %v968
    %v1039 = vpack.c.b16 %v973, %v971
    %v1040 = vpack.c.b16 %v974, %v972
    %v1041 = vpack.c.b16 %v977, %v975
    %v1042 = vpack.c.b16 %v978, %v976
    %1107 = vmatpush.bf16.msra.mxu0 %v993
    %1108 = vmatpush.bf16.msra.mxu0 %v991
    %1109 = vmatpush.bf16.msra.mxu0 %v989
    %1110 = vmatpush.bf16.msra.mxu0 %v987
    %1111 = vmatpush.bf16.msra.mxu0 %v985
    %1112 = vmatpush.bf16.msra.mxu0 %v983
    %1113 = vmatpush.bf16.msra.mxu0 %v981
    %1114 = vmatpush.bf16.msra.mxu0 %v979
    %1115 = vmatmul.bf16.gmra.mxu0 %v713
    %v1116 = vpop.f32.mrf.mxu0
    %v1117 = vadd.f32 %v783, %v1116
    %v1118 = vpop.f32.mrf.mxu0
    %1119 = vdwg.mxu0
    %1120 = vmatpush.bf16.msra.mxu0 %v1009
    %1121 = vmatpush.bf16.msra.mxu0 %v1007
    %1122 = vmatpush.bf16.msra.mxu0 %v1005
    %1123 = vmatpush.bf16.msra.mxu0 %v1003
    %1124 = vmatpush.bf16.msra.mxu0 %v1001
    %1125 = vmatpush.bf16.msra.mxu0 %v999
    %1126 = vmatpush.bf16.msra.mxu0 %v997
    %1127 = vmatpush.bf16.msra.mxu0 %v995
    %1128 = vmatmul.bf16.gmra.mxu0 %v714
    %v1129 = vpop.f32.mrf.mxu0
    %v1130 = vadd.f32 %v1117, %v1129
    %v1131 = vpop.f32.mrf.mxu0
    %1132 = vdwg.mxu0
    %1133 = vmatpush.bf16.msra.mxu0 %v1025
    %1134 = vmatpush.bf16.msra.mxu0 %v1023
    %1135 = vmatpush.bf16.msra.mxu0 %v1021
    %1136 = vmatpush.bf16.msra.mxu0 %v1019
    %1137 = vmatpush.bf16.msra.mxu0 %v1017
    %1138 = vmatpush.bf16.msra.mxu0 %v1015
    %1139 = vmatpush.bf16.msra.mxu0 %v1013
    %1140 = vmatpush.bf16.msra.mxu0 %v1011
    %1141 = vmatmul.bf16.gmra.mxu0 %v715
    %v1142 = vpop.f32.mrf.mxu0
    %v1143 = vadd.f32 %v1130, %v1142
    %v1144 = vpop.f32.mrf.mxu0
    %1145 = vdwg.mxu0
    %1146 = vmatpush.bf16.msra.mxu0 %v1041
    %1147 = vmatpush.bf16.msra.mxu0 %v1039
    %1148 = vmatpush.bf16.msra.mxu0 %v1037
    %1149 = vmatpush.bf16.msra.mxu0 %v1035
    %1150 = vmatpush.bf16.msra.mxu0 %v1033
    %1151 = vmatpush.bf16.msra.mxu0 %v1031
    %1152 = vmatpush.bf16.msra.mxu0 %v1029
    %1153 = vmatpush.bf16.msra.mxu0 %v1027
    %1154 = vmatmul.bf16.gmra.mxu0 %v716
    %v1155 = vpop.f32.mrf.mxu0
    %v1156 = vadd.f32 %v1143, %v1155
    %v1157 = vpop.f32.mrf.mxu0
    %1158 = vdwg.mxu0
    %1159 = vmatpush.bf16.msra.mxu0 %v994
    %1160 = vmatpush.bf16.msra.mxu0 %v992
    %1161 = vmatpush.bf16.msra.mxu0 %v990
    %1162 = vmatpush.bf16.msra.mxu0 %v988
    %1163 = vmatpush.bf16.msra.mxu0 %v986
    %1164 = vmatpush.bf16.msra.mxu0 %v984
    %1165 = vmatpush.bf16.msra.mxu0 %v982
    %1166 = vmatpush.bf16.msra.mxu0 %v980
    %1167 = vmatmul.bf16.gmra.mxu0 %v713
    %v1168 = vpop.f32.mrf.mxu0
    %v1169 = vadd.f32 %v784, %v1168
    %v1170 = vpop.f32.mrf.mxu0
    %1171 = vdwg.mxu0
    %1172 = vmatpush.bf16.msra.mxu0 %v1010
    %1173 = vmatpush.bf16.msra.mxu0 %v1008
    %1174 = vmatpush.bf16.msra.mxu0 %v1006
    %1175 = vmatpush.bf16.msra.mxu0 %v1004
    %1176 = vmatpush.bf16.msra.mxu0 %v1002
    %1177 = vmatpush.bf16.msra.mxu0 %v1000
    %1178 = vmatpush.bf16.msra.mxu0 %v998
    %1179 = vmatpush.bf16.msra.mxu0 %v996
    %1180 = vmatmul.bf16.gmra.mxu0 %v714
    %v1181 = vpop.f32.mrf.mxu0
    %v1182 = vadd.f32 %v1169, %v1181
    %v1183 = vpop.f32.mrf.mxu0
    %1184 = vdwg.mxu0
    %1185 = vmatpush.bf16.msra.mxu0 %v1026
    %1186 = vmatpush.bf16.msra.mxu0 %v1024
    %1187 = vmatpush.bf16.msra.mxu0 %v1022
    %1188 = vmatpush.bf16.msra.mxu0 %v1020
    %1189 = vmatpush.bf16.msra.mxu0 %v1018
    %1190 = vmatpush.bf16.msra.mxu0 %v1016
    %1191 = vmatpush.bf16.msra.mxu0 %v1014
    %1192 = vmatpush.bf16.msra.mxu0 %v1012
    %1193 = vmatmul.bf16.gmra.mxu0 %v715
    %v1194 = vpop.f32.mrf.mxu0
    %v1195 = vadd.f32 %v1182, %v1194
    %v1196 = vpop.f32.mrf.mxu0
    %1197 = vdwg.mxu0
    %1198 = vmatpush.bf16.msra.mxu0 %v1042
    %1199 = vmatpush.bf16.msra.mxu0 %v1040
    %1200 = vmatpush.bf16.msra.mxu0 %v1038
    %1201 = vmatpush.bf16.msra.mxu0 %v1036
    %1202 = vmatpush.bf16.msra.mxu0 %v1034
    %1203 = vmatpush.bf16.msra.mxu0 %v1032
    %1204 = vmatpush.bf16.msra.mxu0 %v1030
    %1205 = vmatpush.bf16.msra.mxu0 %v1028
    %1206 = vmatmul.bf16.gmra.mxu0 %v716
    %v1207 = vpop.f32.mrf.mxu0
    %v1208 = vadd.f32 %v1195, %v1207
    %v1209 = vpop.f32.mrf.mxu0
    %1210 = vdwg.mxu0
    %vm1211 = vcmp.gt.f32.partialorder %v1156, 0.0
    %vm1212 = vcmp.gt.f32.partialorder %v1208, 0.0
    %v1213 = vmul.f32 %v1156, 0.2
    %v1214 = vmul.f32 %v1208, 0.2
    %v1215 = vsel %vm1211, %v1156, %v1213
    %v1216 = vsel %vm1212, %v1208, %v1214
    %v1217 = vpack.c.bf16 %v1215, %v1215
    %v1218 = vpack.c.bf16 %v1216, %v1216
    %v1219 = vld [vmem:[#allocation11] sm:$0xff]
    %v1220 = vld [vmem:[#allocation11 + $0x8] sm:$0xff]
    %v1221 = vld [vmem:[#allocation11 + $0x10] sm:$0xff]
    %v1222 = vld [vmem:[#allocation11 + $0x18] sm:$0xff]
    %v1223 = vld [vmem:[#allocation11 + $0x20] sm:$0xff]
    %v1224 = vld [vmem:[#allocation11 + $0x28] sm:$0xff]
    %v1225 = vld [vmem:[#allocation11 + $0x30] sm:$0xff]
    %v1226 = vld [vmem:[#allocation11 + $0x38] sm:$0xff]
    %v1227 = vld [vmem:[#allocation11 + $0x40] sm:$0xff]
    %v1228 = vld [vmem:[#allocation11 + $0x48] sm:$0xff]
    %v1229 = vld [vmem:[#allocation11 + $0x50] sm:$0xff]
    %v1230 = vld [vmem:[#allocation11 + $0x58] sm:$0xff]
    %v1231 = vld [vmem:[#allocation11 + $0x60] sm:$0xff]
    %v1232 = vld [vmem:[#allocation11 + $0x68] sm:$0xff]
    %v1233 = vld [vmem:[#allocation11 + $0x70] sm:$0xff]
    %v1234 = vld [vmem:[#allocation11 + $0x78] sm:$0xff]
    %v1235 = vld [vmem:[#allocation11 + $0x80] sm:$0xff]
    %v1236 = vld [vmem:[#allocation11 + $0x88] sm:$0xff]
    %v1237 = vld [vmem:[#allocation11 + $0x90] sm:$0xff]
    %v1238 = vld [vmem:[#allocation11 + $0x98] sm:$0xff]
    %v1239 = vld [vmem:[#allocation11 + $0xa0] sm:$0xff]
    %v1240 = vld [vmem:[#allocation11 + $0xa8] sm:$0xff]
    %v1241 = vld [vmem:[#allocation11 + $0xb0] sm:$0xff]
    %v1242 = vld [vmem:[#allocation11 + $0xb8] sm:$0xff]
    %v1243 = vld [vmem:[#allocation11 + $0xc0] sm:$0xff]
    %v1244 = vld [vmem:[#allocation11 + $0xc8] sm:$0xff]
    %v1245 = vld [vmem:[#allocation11 + $0xd0] sm:$0xff]
    %v1246 = vld [vmem:[#allocation11 + $0xd8] sm:$0xff]
    %v1247 = vld [vmem:[#allocation11 + $0xe0] sm:$0xff]
    %v1248 = vld [vmem:[#allocation11 + $0xe8] sm:$0xff]
    %v1249 = vld [vmem:[#allocation11 + $0xf0] sm:$0xff]
    %v1250 = vld [vmem:[#allocation11 + $0xf8] sm:$0xff]
    %v1251 = vld [vmem:[#allocation13] sm:$0x3]
    %v1253 = vperm.slane %v1251, 0
    %v1254 = vperm.slane %v1251, 1
    %v1289 = vunpack.c.l.b16 %v1219
    %v1290 = vunpack.c.h.b16 %v1219
    %v1291 = vunpack.c.l.b16 %v1220
    %v1292 = vunpack.c.h.b16 %v1220
    %v1293 = vunpack.c.l.b16 %v1221
    %v1294 = vunpack.c.h.b16 %v1221
    %v1295 = vunpack.c.l.b16 %v1222
    %v1296 = vunpack.c.h.b16 %v1222
    %v1297 = vunpack.c.l.b16 %v1223
    %v1298 = vunpack.c.h.b16 %v1223
    %v1299 = vunpack.c.l.b16 %v1224
    %v1300 = vunpack.c.h.b16 %v1224
    %v1301 = vunpack.c.l.b16 %v1225
    %v1302 = vunpack.c.h.b16 %v1225
    %v1303 = vunpack.c.l.b16 %v1226
    %v1304 = vunpack.c.h.b16 %v1226
    %v1305 = vunpack.c.l.b16 %v1227
    %v1306 = vunpack.c.h.b16 %v1227
    %v1307 = vunpack.c.l.b16 %v1228
    %v1308 = vunpack.c.h.b16 %v1228
    %v1309 = vunpack.c.l.b16 %v1229
    %v1310 = vunpack.c.h.b16 %v1229
    %v1311 = vunpack.c.l.b16 %v1230
    %v1312 = vunpack.c.h.b16 %v1230
    %v1313 = vunpack.c.l.b16 %v1231
    %v1314 = vunpack.c.h.b16 %v1231
    %v1315 = vunpack.c.l.b16 %v1232
    %v1316 = vunpack.c.h.b16 %v1232
    %v1317 = vunpack.c.l.b16 %v1233
    %v1318 = vunpack.c.h.b16 %v1233
    %v1319 = vunpack.c.l.b16 %v1234
    %v1320 = vunpack.c.h.b16 %v1234
    %v1321 = vunpack.c.l.b16 %v1235
    %v1322 = vunpack.c.h.b16 %v1235
    %v1323 = vunpack.c.l.b16 %v1236
    %v1324 = vunpack.c.h.b16 %v1236
    %v1325 = vunpack.c.l.b16 %v1237
    %v1326 = vunpack.c.h.b16 %v1237
    %v1327 = vunpack.c.l.b16 %v1238
    %v1328 = vunpack.c.h.b16 %v1238
    %v1329 = vunpack.c.l.b16 %v1239
    %v1330 = vunpack.c.h.b16 %v1239
    %v1331 = vunpack.c.l.b16 %v1240
    %v1332 = vunpack.c.h.b16 %v1240
    %v1333 = vunpack.c.l.b16 %v1241
    %v1334 = vunpack.c.h.b16 %v1241
    %v1335 = vunpack.c.l.b16 %v1242
    %v1336 = vunpack.c.h.b16 %v1242
    %v1337 = vunpack.c.l.b16 %v1243
    %v1338 = vunpack.c.h.b16 %v1243
    %v1339 = vunpack.c.l.b16 %v1244
    %v1340 = vunpack.c.h.b16 %v1244
    %v1341 = vunpack.c.l.b16 %v1245
    %v1342 = vunpack.c.h.b16 %v1245
    %v1343 = vunpack.c.l.b16 %v1246
    %v1344 = vunpack.c.h.b16 %v1246
    %v1345 = vunpack.c.l.b16 %v1247
    %v1346 = vunpack.c.h.b16 %v1247
    %v1347 = vunpack.c.l.b16 %v1248
    %v1348 = vunpack.c.h.b16 %v1248
    %v1349 = vunpack.c.l.b16 %v1249
    %v1350 = vunpack.c.h.b16 %v1249
    %v1351 = vunpack.c.l.b16 %v1250
    %v1352 = vunpack.c.h.b16 %v1250
    %v1353 = vpack.c.b16 %v1291, %v1289
    %v1354 = vpack.c.b16 %v1292, %v1290
    %v1355 = vpack.c.b16 %v1295, %v1293
    %v1356 = vpack.c.b16 %v1296, %v1294
    %v1357 = vpack.c.b16 %v1299, %v1297
    %v1358 = vpack.c.b16 %v1300, %v1298
    %v1359 = vpack.c.b16 %v1303, %v1301
    %v1360 = vpack.c.b16 %v1304, %v1302
    %v1361 = vpack.c.b16 %v1307, %v1305
    %v1362 = vpack.c.b16 %v1308, %v1306
    %v1363 = vpack.c.b16 %v1311, %v1309
    %v1364 = vpack.c.b16 %v1312, %v1310
    %v1365 = vpack.c.b16 %v1315, %v1313
    %v1366 = vpack.c.b16 %v1316, %v1314
    %v1367 = vpack.c.b16 %v1319, %v1317
    %v1368 = vpack.c.b16 %v1320, %v1318
    %v1369 = vpack.c.b16 %v1323, %v1321
    %v1370 = vpack.c.b16 %v1324, %v1322
    %v1371 = vpack.c.b16 %v1327, %v1325
    %v1372 = vpack.c.b16 %v1328, %v1326
    %v1373 = vpack.c.b16 %v1331, %v1329
    %v1374 = vpack.c.b16 %v1332, %v1330
    %v1375 = vpack.c.b16 %v1335, %v1333
    %v1376 = vpack.c.b16 %v1336, %v1334
    %v1377 = vpack.c.b16 %v1339, %v1337
    %v1378 = vpack.c.b16 %v1340, %v1338
    %v1379 = vpack.c.b16 %v1343, %v1341
    %v1380 = vpack.c.b16 %v1344, %v1342
    %v1381 = vpack.c.b16 %v1347, %v1345
    %v1382 = vpack.c.b16 %v1348, %v1346
    %v1383 = vpack.c.b16 %v1351, %v1349
    %v1384 = vpack.c.b16 %v1352, %v1350
    %1417 = vmatpush.bf16.msra.mxu0 %v1367
    %1418 = vmatpush.bf16.msra.mxu0 %v1365
    %1419 = vmatpush.bf16.msra.mxu0 %v1363
    %1420 = vmatpush.bf16.msra.mxu0 %v1361
    %1421 = vmatpush.bf16.msra.mxu0 %v1359
    %1422 = vmatpush.bf16.msra.mxu0 %v1357
    %1423 = vmatpush.bf16.msra.mxu0 %v1355
    %1424 = vmatpush.bf16.msra.mxu0 %v1353
    %1425 = vmatmul.bf16.gmra.mxu0 %v1217
    %v1426 = vpop.f32.mrf.mxu0
    %v1427 = vadd.f32 %v1253, %v1426
    %v1428 = vpop.f32.mrf.mxu0
    %1429 = vdwg.mxu0
    %1430 = vmatpush.bf16.msra.mxu0 %v1383
    %1431 = vmatpush.bf16.msra.mxu0 %v1381
    %1432 = vmatpush.bf16.msra.mxu0 %v1379
    %1433 = vmatpush.bf16.msra.mxu0 %v1377
    %1434 = vmatpush.bf16.msra.mxu0 %v1375
    %1435 = vmatpush.bf16.msra.mxu0 %v1373
    %1436 = vmatpush.bf16.msra.mxu0 %v1371
    %1437 = vmatpush.bf16.msra.mxu0 %v1369
    %1438 = vmatmul.bf16.gmra.mxu0 %v1218
    %v1439 = vpop.f32.mrf.mxu0
    %v1440 = vadd.f32 %v1427, %v1439
    %v1441 = vpop.f32.mrf.mxu0
    %1442 = vdwg.mxu0
    %1443 = vmatpush.bf16.msra.mxu0 %v1368
    %1444 = vmatpush.bf16.msra.mxu0 %v1366
    %1445 = vmatpush.bf16.msra.mxu0 %v1364
    %1446 = vmatpush.bf16.msra.mxu0 %v1362
    %1447 = vmatpush.bf16.msra.mxu0 %v1360
    %1448 = vmatpush.bf16.msra.mxu0 %v1358
    %1449 = vmatpush.bf16.msra.mxu0 %v1356
    %1450 = vmatpush.bf16.msra.mxu0 %v1354
    %1451 = vmatmul.bf16.gmra.mxu0 %v1217
    %v1452 = vpop.f32.mrf.mxu0
    %v1453 = vadd.f32 %v1254, %v1452
    %v1454 = vpop.f32.mrf.mxu0
    %1455 = vdwg.mxu0
    %1456 = vmatpush.bf16.msra.mxu0 %v1384
    %1457 = vmatpush.bf16.msra.mxu0 %v1382
    %1458 = vmatpush.bf16.msra.mxu0 %v1380
    %1459 = vmatpush.bf16.msra.mxu0 %v1378
    %1460 = vmatpush.bf16.msra.mxu0 %v1376
    %1461 = vmatpush.bf16.msra.mxu0 %v1374
    %1462 = vmatpush.bf16.msra.mxu0 %v1372
    %1463 = vmatpush.bf16.msra.mxu0 %v1370
    %1464 = vmatmul.bf16.gmra.mxu0 %v1218
    %v1465 = vpop.f32.mrf.mxu0
    %v1466 = vadd.f32 %v1453, %v1465
    %v1467 = vpop.f32.mrf.mxu0
    %1468 = vdwg.mxu0
    %v1469 = vmul.f32 %v1466, 0.5
    %v1470 = vmul.f32 %v1469, 1.442695
    %v1471 = vpow.pop %v1470
    %v1472 = vld [vmem:[#allocation5] sm:$0xff]
    %v1473 = vmul.f32 %v1472, 0.01
    %v1474 = vmul.f32 %v1471, %v1473
    %v1475 = vadd.f32 %v1474, %v1440
    %v1476 = vpack.c.bf16 %v1475, %v1475
    %v1477 = vld [vmem:[#allocation14] sm:$0xff]
    %v1478 = vld [vmem:[#allocation14 + $0x8] sm:$0xff]
    %v1479 = vld [vmem:[#allocation14 + $0x10] sm:$0xff]
    %v1480 = vld [vmem:[#allocation14 + $0x18] sm:$0xff]
    %v1481 = vld [vmem:[#allocation14 + $0x20] sm:$0xff]
    %v1482 = vld [vmem:[#allocation14 + $0x28] sm:$0xff]
    %v1483 = vld [vmem:[#allocation14 + $0x30] sm:$0xff]
    %v1484 = vld [vmem:[#allocation14 + $0x38] sm:$0xff]
    %v1485 = vld [vmem:[#allocation14 + $0x40] sm:$0xff]
    %v1486 = vld [vmem:[#allocation14 + $0x48] sm:$0xff]
    %v1487 = vld [vmem:[#allocation14 + $0x50] sm:$0xff]
    %v1488 = vld [vmem:[#allocation14 + $0x58] sm:$0xff]
    %v1489 = vld [vmem:[#allocation14 + $0x60] sm:$0xff]
    %v1490 = vld [vmem:[#allocation14 + $0x68] sm:$0xff]
    %v1491 = vld [vmem:[#allocation14 + $0x70] sm:$0xff]
    %v1492 = vld [vmem:[#allocation14 + $0x78] sm:$0xff]
    %v1493 = vld [vmem:[%s9] sm:$0x3]
    %v1495 = vperm.slane %v1493, 0
    %v1496 = vperm.slane %v1493, 1
    %v1515 = vunpack.c.l.b16 %v1477
    %v1516 = vunpack.c.h.b16 %v1477
    %v1517 = vunpack.c.l.b16 %v1478
    %v1518 = vunpack.c.h.b16 %v1478
    %v1519 = vunpack.c.l.b16 %v1479
    %v1520 = vunpack.c.h.b16 %v1479
    %v1521 = vunpack.c.l.b16 %v1480
    %v1522 = vunpack.c.h.b16 %v1480
    %v1523 = vunpack.c.l.b16 %v1481
    %v1524 = vunpack.c.h.b16 %v1481
    %v1525 = vunpack.c.l.b16 %v1482
    %v1526 = vunpack.c.h.b16 %v1482
    %v1527 = vunpack.c.l.b16 %v1483
    %v1528 = vunpack.c.h.b16 %v1483
    %v1529 = vunpack.c.l.b16 %v1484
    %v1530 = vunpack.c.h.b16 %v1484
    %v1531 = vunpack.c.l.b16 %v1485
    %v1532 = vunpack.c.h.b16 %v1485
    %v1533 = vunpack.c.l.b16 %v1486
    %v1534 = vunpack.c.h.b16 %v1486
    %v1535 = vunpack.c.l.b16 %v1487
    %v1536 = vunpack.c.h.b16 %v1487
    %v1537 = vunpack.c.l.b16 %v1488
    %v1538 = vunpack.c.h.b16 %v1488
    %v1539 = vunpack.c.l.b16 %v1489
    %v1540 = vunpack.c.h.b16 %v1489
    %v1541 = vunpack.c.l.b16 %v1490
    %v1542 = vunpack.c.h.b16 %v1490
    %v1543 = vunpack.c.l.b16 %v1491
    %v1544 = vunpack.c.h.b16 %v1491
    %v1545 = vunpack.c.l.b16 %v1492
    %v1546 = vunpack.c.h.b16 %v1492
    %v1547 = vpack.c.b16 %v1517, %v1515
    %v1548 = vpack.c.b16 %v1518, %v1516
    %v1549 = vpack.c.b16 %v1521, %v1519
    %v1550 = vpack.c.b16 %v1522, %v1520
    %v1551 = vpack.c.b16 %v1525, %v1523
    %v1552 = vpack.c.b16 %v1526, %v1524
    %v1553 = vpack.c.b16 %v1529, %v1527
    %v1554 = vpack.c.b16 %v1530, %v1528
    %v1555 = vpack.c.b16 %v1533, %v1531
    %v1556 = vpack.c.b16 %v1534, %v1532
    %v1557 = vpack.c.b16 %v1537, %v1535
    %v1558 = vpack.c.b16 %v1538, %v1536
    %v1559 = vpack.c.b16 %v1541, %v1539
    %v1560 = vpack.c.b16 %v1542, %v1540
    %v1561 = vpack.c.b16 %v1545, %v1543
    %v1562 = vpack.c.b16 %v1546, %v1544
    %1579 = vmatpush.bf16.msra.mxu0 %v1561
    %1580 = vmatpush.bf16.msra.mxu0 %v1559
    %1581 = vmatpush.bf16.msra.mxu0 %v1557
    %1582 = vmatpush.bf16.msra.mxu0 %v1555
    %1583 = vmatpush.bf16.msra.mxu0 %v1553
    %1584 = vmatpush.bf16.msra.mxu0 %v1551
    %1585 = vmatpush.bf16.msra.mxu0 %v1549
    %1586 = vmatpush.bf16.msra.mxu0 %v1547
    %1587 = vmatmul.bf16.gmra.mxu0 %v1476
    %v1588 = vpop.f32.mrf.mxu0
    %v1589 = vadd.f32 %v1495, %v1588
    %v1590 = vpop.f32.mrf.mxu0
    %1591 = vdwg.mxu0
    %1592 = vmatpush.bf16.msra.mxu0 %v1562
    %1593 = vmatpush.bf16.msra.mxu0 %v1560
    %1594 = vmatpush.bf16.msra.mxu0 %v1558
    %1595 = vmatpush.bf16.msra.mxu0 %v1556
    %1596 = vmatpush.bf16.msra.mxu0 %v1554
    %1597 = vmatpush.bf16.msra.mxu0 %v1552
    %1598 = vmatpush.bf16.msra.mxu0 %v1550
    %1599 = vmatpush.bf16.msra.mxu0 %v1548
    %1600 = vmatmul.bf16.gmra.mxu0 %v1476
    %v1601 = vpop.f32.mrf.mxu0
    %v1602 = vadd.f32 %v1496, %v1601
    %v1603 = vpop.f32.mrf.mxu0
    %1604 = vdwg.mxu0
    %vm1605 = vcmp.gt.f32.partialorder %v1589, 0.0
    %vm1606 = vcmp.gt.f32.partialorder %v1602, 0.0
    %v1607 = vmul.f32 %v1589, 0.2
    %v1608 = vmul.f32 %v1602, 0.2
    %v1609 = vsel %vm1605, %v1589, %v1607
    %v1610 = vsel %vm1606, %v1602, %v1608
    %v1611 = vpack.c.bf16 %v1609, %v1609
    %v1612 = vpack.c.bf16 %v1610, %v1610
    %v1613 = vld [vmem:[#allocation16] sm:$0xff]
    %v1614 = vld [vmem:[#allocation16 + $0x8] sm:$0xff]
    %v1615 = vld [vmem:[#allocation16 + $0x10] sm:$0xff]
    %v1616 = vld [vmem:[#allocation16 + $0x18] sm:$0xff]
    %v1617 = vld [vmem:[#allocation16 + $0x20] sm:$0xff]
    %v1618 = vld [vmem:[#allocation16 + $0x28] sm:$0xff]
    %v1619 = vld [vmem:[#allocation16 + $0x30] sm:$0xff]
    %v1620 = vld [vmem:[#allocation16 + $0x38] sm:$0xff]
    %v1621 = vld [vmem:[#allocation16 + $0x40] sm:$0xff]
    %v1622 = vld [vmem:[#allocation16 + $0x48] sm:$0xff]
    %v1623 = vld [vmem:[#allocation16 + $0x50] sm:$0xff]
    %v1624 = vld [vmem:[#allocation16 + $0x58] sm:$0xff]
    %v1625 = vld [vmem:[#allocation16 + $0x60] sm:$0xff]
    %v1626 = vld [vmem:[#allocation16 + $0x68] sm:$0xff]
    %v1627 = vld [vmem:[#allocation16 + $0x70] sm:$0xff]
    %v1628 = vld [vmem:[#allocation16 + $0x78] sm:$0xff]
    %v1629 = vld [vmem:[#allocation16 + $0x80] sm:$0xff]
    %v1630 = vld [vmem:[#allocation16 + $0x88] sm:$0xff]
    %v1631 = vld [vmem:[#allocation16 + $0x90] sm:$0xff]
    %v1632 = vld [vmem:[#allocation16 + $0x98] sm:$0xff]
    %v1633 = vld [vmem:[#allocation16 + $0xa0] sm:$0xff]
    %v1634 = vld [vmem:[#allocation16 + $0xa8] sm:$0xff]
    %v1635 = vld [vmem:[#allocation16 + $0xb0] sm:$0xff]
    %v1636 = vld [vmem:[#allocation16 + $0xb8] sm:$0xff]
    %v1637 = vld [vmem:[#allocation16 + $0xc0] sm:$0xff]
    %v1638 = vld [vmem:[#allocation16 + $0xc8] sm:$0xff]
    %v1639 = vld [vmem:[#allocation16 + $0xd0] sm:$0xff]
    %v1640 = vld [vmem:[#allocation16 + $0xd8] sm:$0xff]
    %v1641 = vld [vmem:[#allocation16 + $0xe0] sm:$0xff]
    %v1642 = vld [vmem:[#allocation16 + $0xe8] sm:$0xff]
    %v1643 = vld [vmem:[#allocation16 + $0xf0] sm:$0xff]
    %v1644 = vld [vmem:[#allocation16 + $0xf8] sm:$0xff]
    %v1645 = vld [vmem:[#allocation16 + $0x100] sm:$0xff]
    %v1646 = vld [vmem:[#allocation16 + $0x108] sm:$0xff]
    %v1647 = vld [vmem:[#allocation16 + $0x110] sm:$0xff]
    %v1648 = vld [vmem:[#allocation16 + $0x118] sm:$0xff]
    %v1649 = vld [vmem:[#allocation16 + $0x120] sm:$0xff]
    %v1650 = vld [vmem:[#allocation16 + $0x128] sm:$0xff]
    %v1651 = vld [vmem:[#allocation16 + $0x130] sm:$0xff]
    %v1652 = vld [vmem:[#allocation16 + $0x138] sm:$0xff]
    %v1653 = vld [vmem:[#allocation16 + $0x140] sm:$0xff]
    %v1654 = vld [vmem:[#allocation16 + $0x148] sm:$0xff]
    %v1655 = vld [vmem:[#allocation16 + $0x150] sm:$0xff]
    %v1656 = vld [vmem:[#allocation16 + $0x158] sm:$0xff]
    %v1657 = vld [vmem:[#allocation16 + $0x160] sm:$0xff]
    %v1658 = vld [vmem:[#allocation16 + $0x168] sm:$0xff]
    %v1659 = vld [vmem:[#allocation16 + $0x170] sm:$0xff]
    %v1660 = vld [vmem:[#allocation16 + $0x178] sm:$0xff]
    %v1661 = vld [vmem:[#allocation16 + $0x180] sm:$0xff]
    %v1662 = vld [vmem:[#allocation16 + $0x188] sm:$0xff]
    %v1663 = vld [vmem:[#allocation16 + $0x190] sm:$0xff]
    %v1664 = vld [vmem:[#allocation16 + $0x198] sm:$0xff]
    %v1665 = vld [vmem:[#allocation16 + $0x1a0] sm:$0xff]
    %v1666 = vld [vmem:[#allocation16 + $0x1a8] sm:$0xff]
    %v1667 = vld [vmem:[#allocation16 + $0x1b0] sm:$0xff]
    %v1668 = vld [vmem:[#allocation16 + $0x1b8] sm:$0xff]
    %v1669 = vld [vmem:[#allocation16 + $0x1c0] sm:$0xff]
    %v1670 = vld [vmem:[#allocation16 + $0x1c8] sm:$0xff]
    %v1671 = vld [vmem:[#allocation16 + $0x1d0] sm:$0xff]
    %v1672 = vld [vmem:[#allocation16 + $0x1d8] sm:$0xff]
    %v1673 = vld [vmem:[#allocation16 + $0x1e0] sm:$0xff]
    %v1674 = vld [vmem:[#allocation16 + $0x1e8] sm:$0xff]
    %v1675 = vld [vmem:[#allocation16 + $0x1f0] sm:$0xff]
    %v1676 = vld [vmem:[#allocation16 + $0x1f8] sm:$0xff]
    %v1677 = vld [vmem:[%s11] sm:$0xf]
    %v1679 = vperm.slane %v1677, 0
    %v1680 = vperm.slane %v1677, 1
    %v1681 = vperm.slane %v1677, 2
    %v1682 = vperm.slane %v1677, 3
    %v1751 = vunpack.c.l.b16 %v1613
    %v1752 = vunpack.c.h.b16 %v1613
    %v1753 = vunpack.c.l.b16 %v1614
    %v1754 = vunpack.c.h.b16 %v1614
    %v1755 = vunpack.c.l.b16 %v1615
    %v1756 = vunpack.c.h.b16 %v1615
    %v1757 = vunpack.c.l.b16 %v1616
    %v1758 = vunpack.c.h.b16 %v1616
    %v1759 = vunpack.c.l.b16 %v1617
    %v1760 = vunpack.c.h.b16 %v1617
    %v1761 = vunpack.c.l.b16 %v1618
    %v1762 = vunpack.c.h.b16 %v1618
    %v1763 = vunpack.c.l.b16 %v1619
    %v1764 = vunpack.c.h.b16 %v1619
    %v1765 = vunpack.c.l.b16 %v1620
    %v1766 = vunpack.c.h.b16 %v1620
    %v1767 = vunpack.c.l.b16 %v1621
    %v1768 = vunpack.c.h.b16 %v1621
    %v1769 = vunpack.c.l.b16 %v1622
    %v1770 = vunpack.c.h.b16 %v1622
    %v1771 = vunpack.c.l.b16 %v1623
    %v1772 = vunpack.c.h.b16 %v1623
    %v1773 = vunpack.c.l.b16 %v1624
    %v1774 = vunpack.c.h.b16 %v1624
    %v1775 = vunpack.c.l.b16 %v1625
    %v1776 = vunpack.c.h.b16 %v1625
    %v1777 = vunpack.c.l.b16 %v1626
    %v1778 = vunpack.c.h.b16 %v1626
    %v1779 = vunpack.c.l.b16 %v1627
    %v1780 = vunpack.c.h.b16 %v1627
    %v1781 = vunpack.c.l.b16 %v1628
    %v1782 = vunpack.c.h.b16 %v1628
    %v1783 = vunpack.c.l.b16 %v1629
    %v1784 = vunpack.c.h.b16 %v1629
    %v1785 = vunpack.c.l.b16 %v1630
    %v1786 = vunpack.c.h.b16 %v1630
    %v1787 = vunpack.c.l.b16 %v1631
    %v1788 = vunpack.c.h.b16 %v1631
    %v1789 = vunpack.c.l.b16 %v1632
    %v1790 = vunpack.c.h.b16 %v1632
    %v1791 = vunpack.c.l.b16 %v1633
    %v1792 = vunpack.c.h.b16 %v1633
    %v1793 = vunpack.c.l.b16 %v1634
    %v1794 = vunpack.c.h.b16 %v1634
    %v1795 = vunpack.c.l.b16 %v1635
    %v1796 = vunpack.c.h.b16 %v1635
    %v1797 = vunpack.c.l.b16 %v1636
    %v1798 = vunpack.c.h.b16 %v1636
    %v1799 = vunpack.c.l.b16 %v1637
    %v1800 = vunpack.c.h.b16 %v1637
    %v1801 = vunpack.c.l.b16 %v1638
    %v1802 = vunpack.c.h.b16 %v1638
    %v1803 = vunpack.c.l.b16 %v1639
    %v1804 = vunpack.c.h.b16 %v1639
    %v1805 = vunpack.c.l.b16 %v1640
    %v1806 = vunpack.c.h.b16 %v1640
    %v1807 = vunpack.c.l.b16 %v1641
    %v1808 = vunpack.c.h.b16 %v1641
    %v1809 = vunpack.c.l.b16 %v1642
    %v1810 = vunpack.c.h.b16 %v1642
    %v1811 = vunpack.c.l.b16 %v1643
    %v1812 = vunpack.c.h.b16 %v1643
    %v1813 = vunpack.c.l.b16 %v1644
    %v1814 = vunpack.c.h.b16 %v1644
    %v1815 = vunpack.c.l.b16 %v1645
    %v1816 = vunpack.c.h.b16 %v1645
    %v1817 = vunpack.c.l.b16 %v1646
    %v1818 = vunpack.c.h.b16 %v1646
    %v1819 = vunpack.c.l.b16 %v1647
    %v1820 = vunpack.c.h.b16 %v1647
    %v1821 = vunpack.c.l.b16 %v1648
    %v1822 = vunpack.c.h.b16 %v1648
    %v1823 = vunpack.c.l.b16 %v1649
    %v1824 = vunpack.c.h.b16 %v1649
    %v1825 = vunpack.c.l.b16 %v1650
    %v1826 = vunpack.c.h.b16 %v1650
    %v1827 = vunpack.c.l.b16 %v1651
    %v1828 = vunpack.c.h.b16 %v1651
    %v1829 = vunpack.c.l.b16 %v1652
    %v1830 = vunpack.c.h.b16 %v1652
    %v1831 = vunpack.c.l.b16 %v1653
    %v1832 = vunpack.c.h.b16 %v1653
    %v1833 = vunpack.c.l.b16 %v1654
    %v1834 = vunpack.c.h.b16 %v1654
    %v1835 = vunpack.c.l.b16 %v1655
    %v1836 = vunpack.c.h.b16 %v1655
    %v1837 = vunpack.c.l.b16 %v1656
    %v1838 = vunpack.c.h.b16 %v1656
    %v1839 = vunpack.c.l.b16 %v1657
    %v1840 = vunpack.c.h.b16 %v1657
    %v1841 = vunpack.c.l.b16 %v1658
    %v1842 = vunpack.c.h.b16 %v1658
    %v1843 = vunpack.c.l.b16 %v1659
    %v1844 = vunpack.c.h.b16 %v1659
    %v1845 = vunpack.c.l.b16 %v1660
    %v1846 = vunpack.c.h.b16 %v1660
    %v1847 = vunpack.c.l.b16 %v1661
    %v1848 = vunpack.c.h.b16 %v1661
    %v1849 = vunpack.c.l.b16 %v1662
    %v1850 = vunpack.c.h.b16 %v1662
    %v1851 = vunpack.c.l.b16 %v1663
    %v1852 = vunpack.c.h.b16 %v1663
    %v1853 = vunpack.c.l.b16 %v1664
    %v1854 = vunpack.c.h.b16 %v1664
    %v1855 = vunpack.c.l.b16 %v1665
    %v1856 = vunpack.c.h.b16 %v1665
    %v1857 = vunpack.c.l.b16 %v1666
    %v1858 = vunpack.c.h.b16 %v1666
    %v1859 = vunpack.c.l.b16 %v1667
    %v1860 = vunpack.c.h.b16 %v1667
    %v1861 = vunpack.c.l.b16 %v1668
    %v1862 = vunpack.c.h.b16 %v1668
    %v1863 = vunpack.c.l.b16 %v1669
    %v1864 = vunpack.c.h.b16 %v1669
    %v1865 = vunpack.c.l.b16 %v1670
    %v1866 = vunpack.c.h.b16 %v1670
    %v1867 = vunpack.c.l.b16 %v1671
    %v1868 = vunpack.c.h.b16 %v1671
    %v1869 = vunpack.c.l.b16 %v1672
    %v1870 = vunpack.c.h.b16 %v1672
    %v1871 = vunpack.c.l.b16 %v1673
    %v1872 = vunpack.c.h.b16 %v1673
    %v1873 = vunpack.c.l.b16 %v1674
    %v1874 = vunpack.c.h.b16 %v1674
    %v1875 = vunpack.c.l.b16 %v1675
    %v1876 = vunpack.c.h.b16 %v1675
    %v1877 = vunpack.c.l.b16 %v1676
    %v1878 = vunpack.c.h.b16 %v1676
    %v1879 = vpack.c.b16 %v1755, %v1751
    %v1880 = vpack.c.b16 %v1756, %v1752
    %v1881 = vpack.c.b16 %v1757, %v1753
    %v1882 = vpack.c.b16 %v1758, %v1754
    %v1883 = vpack.c.b16 %v1763, %v1759
    %v1884 = vpack.c.b16 %v1764, %v1760
    %v1885 = vpack.c.b16 %v1765, %v1761
    %v1886 = vpack.c.b16 %v1766, %v1762
    %v1887 = vpack.c.b16 %v1771, %v1767
    %v1888 = vpack.c.b16 %v1772, %v1768
    %v1889 = vpack.c.b16 %v1773, %v1769
    %v1890 = vpack.c.b16 %v1774, %v1770
    %v1891 = vpack.c.b16 %v1779, %v1775
    %v1892 = vpack.c.b16 %v1780, %v1776
    %v1893 = vpack.c.b16 %v1781, %v1777
    %v1894 = vpack.c.b16 %v1782, %v1778
    %v1895 = vpack.c.b16 %v1787, %v1783
    %v1896 = vpack.c.b16 %v1788, %v1784
    %v1897 = vpack.c.b16 %v1789, %v1785
    %v1898 = vpack.c.b16 %v1790, %v1786
    %v1899 = vpack.c.b16 %v1795, %v1791
    %v1900 = vpack.c.b16 %v1796, %v1792
    %v1901 = vpack.c.b16 %v1797, %v1793
    %v1902 = vpack.c.b16 %v1798, %v1794
    %v1903 = vpack.c.b16 %v1803, %v1799
    %v1904 = vpack.c.b16 %v1804, %v1800
    %v1905 = vpack.c.b16 %v1805, %v1801
    %v1906 = vpack.c.b16 %v1806, %v1802
    %v1907 = vpack.c.b16 %v1811, %v1807
    %v1908 = vpack.c.b16 %v1812, %v1808
    %v1909 = vpack.c.b16 %v1813, %v1809
    %v1910 = vpack.c.b16 %v1814, %v1810
    %v1911 = vpack.c.b16 %v1819, %v1815
    %v1912 = vpack.c.b16 %v1820, %v1816
    %v1913 = vpack.c.b16 %v1821, %v1817
    %v1914 = vpack.c.b16 %v1822, %v1818
    %v1915 = vpack.c.b16 %v1827, %v1823
    %v1916 = vpack.c.b16 %v1828, %v1824
    %v1917 = vpack.c.b16 %v1829, %v1825
    %v1918 = vpack.c.b16 %v1830, %v1826
    %v1919 = vpack.c.b16 %v1835, %v1831
    %v1920 = vpack.c.b16 %v1836, %v1832
    %v1921 = vpack.c.b16 %v1837, %v1833
    %v1922 = vpack.c.b16 %v1838, %v1834
    %v1923 = vpack.c.b16 %v1843, %v1839
    %v1924 = vpack.c.b16 %v1844, %v1840
    %v1925 = vpack.c.b16 %v1845, %v1841
    %v1926 = vpack.c.b16 %v1846, %v1842
    %v1927 = vpack.c.b16 %v1851, %v1847
    %v1928 = vpack.c.b16 %v1852, %v1848
    %v1929 = vpack.c.b16 %v1853, %v1849
    %v1930 = vpack.c.b16 %v1854, %v1850
    %v1931 = vpack.c.b16 %v1859, %v1855
    %v1932 = vpack.c.b16 %v1860, %v1856
    %v1933 = vpack.c.b16 %v1861, %v1857
    %v1934 = vpack.c.b16 %v1862, %v1858
    %v1935 = vpack.c.b16 %v1867, %v1863
    %v1936 = vpack.c.b16 %v1868, %v1864
    %v1937 = vpack.c.b16 %v1869, %v1865
    %v1938 = vpack.c.b16 %v1870, %v1866
    %v1939 = vpack.c.b16 %v1875, %v1871
    %v1940 = vpack.c.b16 %v1876, %v1872
    %v1941 = vpack.c.b16 %v1877, %v1873
    %v1942 = vpack.c.b16 %v1878, %v1874
    %2007 = vmatpush.bf16.msra.mxu0 %v1907
    %2008 = vmatpush.bf16.msra.mxu0 %v1903
    %2009 = vmatpush.bf16.msra.mxu0 %v1899
    %2010 = vmatpush.bf16.msra.mxu0 %v1895
    %2011 = vmatpush.bf16.msra.mxu0 %v1891
    %2012 = vmatpush.bf16.msra.mxu0 %v1887
    %2013 = vmatpush.bf16.msra.mxu0 %v1883
    %2014 = vmatpush.bf16.msra.mxu0 %v1879
    %2015 = vmatmul.bf16.gmra.mxu0 %v1611
    %v2016 = vpop.f32.mrf.mxu0
    %v2017 = vadd.f32 %v1679, %v2016
    %v2018 = vpop.f32.mrf.mxu0
    %2019 = vdwg.mxu0
    %2020 = vmatpush.bf16.msra.mxu0 %v1939
    %2021 = vmatpush.bf16.msra.mxu0 %v1935
    %2022 = vmatpush.bf16.msra.mxu0 %v1931
    %2023 = vmatpush.bf16.msra.mxu0 %v1927
    %2024 = vmatpush.bf16.msra.mxu0 %v1923
    %2025 = vmatpush.bf16.msra.mxu0 %v1919
    %2026 = vmatpush.bf16.msra.mxu0 %v1915
    %2027 = vmatpush.bf16.msra.mxu0 %v1911
    %2028 = vmatmul.bf16.gmra.mxu0 %v1612
    %v2029 = vpop.f32.mrf.mxu0
    %v2030 = vadd.f32 %v2017, %v2029
    %v2031 = vpop.f32.mrf.mxu0
    %2032 = vdwg.mxu0
    %2033 = vmatpush.bf16.msra.mxu0 %v1908
    %2034 = vmatpush.bf16.msra.mxu0 %v1904
    %2035 = vmatpush.bf16.msra.mxu0 %v1900
    %2036 = vmatpush.bf16.msra.mxu0 %v1896
    %2037 = vmatpush.bf16.msra.mxu0 %v1892
    %2038 = vmatpush.bf16.msra.mxu0 %v1888
    %2039 = vmatpush.bf16.msra.mxu0 %v1884
    %2040 = vmatpush.bf16.msra.mxu0 %v1880
    %2041 = vmatmul.bf16.gmra.mxu0 %v1611
    %v2042 = vpop.f32.mrf.mxu0
    %v2043 = vadd.f32 %v1680, %v2042
    %v2044 = vpop.f32.mrf.mxu0
    %2045 = vdwg.mxu0
    %2046 = vmatpush.bf16.msra.mxu0 %v1940
    %2047 = vmatpush.bf16.msra.mxu0 %v1936
    %2048 = vmatpush.bf16.msra.mxu0 %v1932
    %2049 = vmatpush.bf16.msra.mxu0 %v1928
    %2050 = vmatpush.bf16.msra.mxu0 %v1924
    %2051 = vmatpush.bf16.msra.mxu0 %v1920
    %2052 = vmatpush.bf16.msra.mxu0 %v1916
    %2053 = vmatpush.bf16.msra.mxu0 %v1912
    %2054 = vmatmul.bf16.gmra.mxu0 %v1612
    %v2055 = vpop.f32.mrf.mxu0
    %v2056 = vadd.f32 %v2043, %v2055
    %v2057 = vpop.f32.mrf.mxu0
    %2058 = vdwg.mxu0
    %2059 = vmatpush.bf16.msra.mxu0 %v1909
    %2060 = vmatpush.bf16.msra.mxu0 %v1905
    %2061 = vmatpush.bf16.msra.mxu0 %v1901
    %2062 = vmatpush.bf16.msra.mxu0 %v1897
    %2063 = vmatpush.bf16.msra.mxu0 %v1893
    %2064 = vmatpush.bf16.msra.mxu0 %v1889
    %2065 = vmatpush.bf16.msra.mxu0 %v1885
    %2066 = vmatpush.bf16.msra.mxu0 %v1881
    %2067 = vmatmul.bf16.gmra.mxu0 %v1611
    %v2068 = vpop.f32.mrf.mxu0
    %v2069 = vadd.f32 %v1681, %v2068
    %v2070 = vpop.f32.mrf.mxu0
    %2071 = vdwg.mxu0
    %2072 = vmatpush.bf16.msra.mxu0 %v1941
    %2073 = vmatpush.bf16.msra.mxu0 %v1937
    %2074 = vmatpush.bf16.msra.mxu0 %v1933
    %2075 = vmatpush.bf16.msra.mxu0 %v1929
    %2076 = vmatpush.bf16.msra.mxu0 %v1925
    %2077 = vmatpush.bf16.msra.mxu0 %v1921
    %2078 = vmatpush.bf16.msra.mxu0 %v1917
    %2079 = vmatpush.bf16.msra.mxu0 %v1913
    %2080 = vmatmul.bf16.gmra.mxu0 %v1612
    %v2081 = vpop.f32.mrf.mxu0
    %v2082 = vadd.f32 %v2069, %v2081
    %v2083 = vpop.f32.mrf.mxu0
    %2084 = vdwg.mxu0
    %2085 = vmatpush.bf16.msra.mxu0 %v1910
    %2086 = vmatpush.bf16.msra.mxu0 %v1906
    %2087 = vmatpush.bf16.msra.mxu0 %v1902
    %2088 = vmatpush.bf16.msra.mxu0 %v1898
    %2089 = vmatpush.bf16.msra.mxu0 %v1894
    %2090 = vmatpush.bf16.msra.mxu0 %v1890
    %2091 = vmatpush.bf16.msra.mxu0 %v1886
    %2092 = vmatpush.bf16.msra.mxu0 %v1882
    %2093 = vmatmul.bf16.gmra.mxu0 %v1611
    %v2094 = vpop.f32.mrf.mxu0
    %v2095 = vadd.f32 %v1682, %v2094
    %v2096 = vpop.f32.mrf.mxu0
    %2097 = vdwg.mxu0
    %2098 = vmatpush.bf16.msra.mxu0 %v1942
    %2099 = vmatpush.bf16.msra.mxu0 %v1938
    %2100 = vmatpush.bf16.msra.mxu0 %v1934
    %2101 = vmatpush.bf16.msra.mxu0 %v1930
    %2102 = vmatpush.bf16.msra.mxu0 %v1926
    %2103 = vmatpush.bf16.msra.mxu0 %v1922
    %2104 = vmatpush.bf16.msra.mxu0 %v1918
    %2105 = vmatpush.bf16.msra.mxu0 %v1914
    %2106 = vmatmul.bf16.gmra.mxu0 %v1612
    %v2107 = vpop.f32.mrf.mxu0
    %v2108 = vadd.f32 %v2095, %v2107
    %v2109 = vpop.f32.mrf.mxu0
    %2110 = vdwg.mxu0
    %vm2111 = vcmp.gt.f32.partialorder %v2030, 0.0
    %vm2112 = vcmp.gt.f32.partialorder %v2056, 0.0
    %vm2113 = vcmp.gt.f32.partialorder %v2082, 0.0
    %vm2114 = vcmp.gt.f32.partialorder %v2108, 0.0
    %v2115 = vmul.f32 %v2030, 0.2
    %v2116 = vmul.f32 %v2056, 0.2
    %v2117 = vmul.f32 %v2082, 0.2
    %v2118 = vmul.f32 %v2108, 0.2
    %v2119 = vsel %vm2111, %v2030, %v2115
    %v2120 = vsel %vm2112, %v2056, %v2116
    %v2121 = vsel %vm2113, %v2082, %v2117
    %v2122 = vsel %vm2114, %v2108, %v2118
    %v2123 = vpack.c.bf16 %v2119, %v2119
    %v2124 = vpack.c.bf16 %v2120, %v2120
    %v2125 = vpack.c.bf16 %v2121, %v2121
    %v2126 = vpack.c.bf16 %v2122, %v2122
    %v2127 = vld [vmem:[#allocation17] sm:$0xff]
    %v2128 = vld [vmem:[#allocation17 + $0x8] sm:$0xff]
    %v2129 = vld [vmem:[#allocation17 + $0x10] sm:$0xff]
    %v2130 = vld [vmem:[#allocation17 + $0x18] sm:$0xff]
    %v2131 = vld [vmem:[#allocation17 + $0x20] sm:$0xff]
    %v2132 = vld [vmem:[#allocation17 + $0x28] sm:$0xff]
    %v2133 = vld [vmem:[#allocation17 + $0x30] sm:$0xff]
    %v2134 = vld [vmem:[#allocation17 + $0x38] sm:$0xff]
    %v2135 = vld [vmem:[#allocation17 + $0x40] sm:$0xff]
    %v2136 = vld [vmem:[#allocation17 + $0x48] sm:$0xff]
    %v2137 = vld [vmem:[#allocation17 + $0x50] sm:$0xff]
    %v2138 = vld [vmem:[#allocation17 + $0x58] sm:$0xff]
    %v2139 = vld [vmem:[#allocation17 + $0x60] sm:$0xff]
    %v2140 = vld [vmem:[#allocation17 + $0x68] sm:$0xff]
    %v2141 = vld [vmem:[#allocation17 + $0x70] sm:$0xff]
    %v2142 = vld [vmem:[#allocation17 + $0x78] sm:$0xff]
    %v2143 = vld [vmem:[#allocation17 + $0x80] sm:$0xff]
    %v2144 = vld [vmem:[#allocation17 + $0x88] sm:$0xff]
    %v2145 = vld [vmem:[#allocation17 + $0x90] sm:$0xff]
    %v2146 = vld [vmem:[#allocation17 + $0x98] sm:$0xff]
    %v2147 = vld [vmem:[#allocation17 + $0xa0] sm:$0xff]
    %v2148 = vld [vmem:[#allocation17 + $0xa8] sm:$0xff]
    %v2149 = vld [vmem:[#allocation17 + $0xb0] sm:$0xff]
    %v2150 = vld [vmem:[#allocation17 + $0xb8] sm:$0xff]
    %v2151 = vld [vmem:[#allocation17 + $0xc0] sm:$0xff]
    %v2152 = vld [vmem:[#allocation17 + $0xc8] sm:$0xff]
    %v2153 = vld [vmem:[#allocation17 + $0xd0] sm:$0xff]
    %v2154 = vld [vmem:[#allocation17 + $0xd8] sm:$0xff]
    %v2155 = vld [vmem:[#allocation17 + $0xe0] sm:$0xff]
    %v2156 = vld [vmem:[#allocation17 + $0xe8] sm:$0xff]
    %v2157 = vld [vmem:[#allocation17 + $0xf0] sm:$0xff]
    %v2158 = vld [vmem:[#allocation17 + $0xf8] sm:$0xff]
    %v2159 = vld [vmem:[#allocation17 + $0x100] sm:$0xff]
    %v2160 = vld [vmem:[#allocation17 + $0x108] sm:$0xff]
    %v2161 = vld [vmem:[#allocation17 + $0x110] sm:$0xff]
    %v2162 = vld [vmem:[#allocation17 + $0x118] sm:$0xff]
    %v2163 = vld [vmem:[#allocation17 + $0x120] sm:$0xff]
    %v2164 = vld [vmem:[#allocation17 + $0x128] sm:$0xff]
    %v2165 = vld [vmem:[#allocation17 + $0x130] sm:$0xff]
    %v2166 = vld [vmem:[#allocation17 + $0x138] sm:$0xff]
    %v2167 = vld [vmem:[#allocation17 + $0x140] sm:$0xff]
    %v2168 = vld [vmem:[#allocation17 + $0x148] sm:$0xff]
    %v2169 = vld [vmem:[#allocation17 + $0x150] sm:$0xff]
    %v2170 = vld [vmem:[#allocation17 + $0x158] sm:$0xff]
    %v2171 = vld [vmem:[#allocation17 + $0x160] sm:$0xff]
    %v2172 = vld [vmem:[#allocation17 + $0x168] sm:$0xff]
    %v2173 = vld [vmem:[#allocation17 + $0x170] sm:$0xff]
    %v2174 = vld [vmem:[#allocation17 + $0x178] sm:$0xff]
    %v2175 = vld [vmem:[#allocation17 + $0x180] sm:$0xff]
    %v2176 = vld [vmem:[#allocation17 + $0x188] sm:$0xff]
    %v2177 = vld [vmem:[#allocation17 + $0x190] sm:$0xff]
    %v2178 = vld [vmem:[#allocation17 + $0x198] sm:$0xff]
    %v2179 = vld [vmem:[#allocation17 + $0x1a0] sm:$0xff]
    %v2180 = vld [vmem:[#allocation17 + $0x1a8] sm:$0xff]
    %v2181 = vld [vmem:[#allocation17 + $0x1b0] sm:$0xff]
    %v2182 = vld [vmem:[#allocation17 + $0x1b8] sm:$0xff]
    %v2183 = vld [vmem:[#allocation17 + $0x1c0] sm:$0xff]
    %v2184 = vld [vmem:[#allocation17 + $0x1c8] sm:$0xff]
    %v2185 = vld [vmem:[#allocation17 + $0x1d0] sm:$0xff]
    %v2186 = vld [vmem:[#allocation17 + $0x1d8] sm:$0xff]
    %v2187 = vld [vmem:[#allocation17 + $0x1e0] sm:$0xff]
    %v2188 = vld [vmem:[#allocation17 + $0x1e8] sm:$0xff]
    %v2189 = vld [vmem:[#allocation17 + $0x1f0] sm:$0xff]
    %v2190 = vld [vmem:[#allocation17 + $0x1f8] sm:$0xff]
    %v2191 = vld [vmem:[%s13] sm:$0x3]
    %v2193 = vperm.slane %v2191, 0
    %v2194 = vperm.slane %v2191, 1
    %v2261 = vunpack.c.l.b16 %v2127
    %v2262 = vunpack.c.h.b16 %v2127
    %v2263 = vunpack.c.l.b16 %v2128
    %v2264 = vunpack.c.h.b16 %v2128
    %v2265 = vunpack.c.l.b16 %v2129
    %v2266 = vunpack.c.h.b16 %v2129
    %v2267 = vunpack.c.l.b16 %v2130
    %v2268 = vunpack.c.h.b16 %v2130
    %v2269 = vunpack.c.l.b16 %v2131
    %v2270 = vunpack.c.h.b16 %v2131
    %v2271 = vunpack.c.l.b16 %v2132
    %v2272 = vunpack.c.h.b16 %v2132
    %v2273 = vunpack.c.l.b16 %v2133
    %v2274 = vunpack.c.h.b16 %v2133
    %v2275 = vunpack.c.l.b16 %v2134
    %v2276 = vunpack.c.h.b16 %v2134
    %v2277 = vunpack.c.l.b16 %v2135
    %v2278 = vunpack.c.h.b16 %v2135
    %v2279 = vunpack.c.l.b16 %v2136
    %v2280 = vunpack.c.h.b16 %v2136
    %v2281 = vunpack.c.l.b16 %v2137
    %v2282 = vunpack.c.h.b16 %v2137
    %v2283 = vunpack.c.l.b16 %v2138
    %v2284 = vunpack.c.h.b16 %v2138
    %v2285 = vunpack.c.l.b16 %v2139
    %v2286 = vunpack.c.h.b16 %v2139
    %v2287 = vunpack.c.l.b16 %v2140
    %v2288 = vunpack.c.h.b16 %v2140
    %v2289 = vunpack.c.l.b16 %v2141
    %v2290 = vunpack.c.h.b16 %v2141
    %v2291 = vunpack.c.l.b16 %v2142
    %v2292 = vunpack.c.h.b16 %v2142
    %v2293 = vunpack.c.l.b16 %v2143
    %v2294 = vunpack.c.h.b16 %v2143
    %v2295 = vunpack.c.l.b16 %v2144
    %v2296 = vunpack.c.h.b16 %v2144
    %v2297 = vunpack.c.l.b16 %v2145
    %v2298 = vunpack.c.h.b16 %v2145
    %v2299 = vunpack.c.l.b16 %v2146
    %v2300 = vunpack.c.h.b16 %v2146
    %v2301 = vunpack.c.l.b16 %v2147
    %v2302 = vunpack.c.h.b16 %v2147
    %v2303 = vunpack.c.l.b16 %v2148
    %v2304 = vunpack.c.h.b16 %v2148
    %v2305 = vunpack.c.l.b16 %v2149
    %v2306 = vunpack.c.h.b16 %v2149
    %v2307 = vunpack.c.l.b16 %v2150
    %v2308 = vunpack.c.h.b16 %v2150
    %v2309 = vunpack.c.l.b16 %v2151
    %v2310 = vunpack.c.h.b16 %v2151
    %v2311 = vunpack.c.l.b16 %v2152
    %v2312 = vunpack.c.h.b16 %v2152
    %v2313 = vunpack.c.l.b16 %v2153
    %v2314 = vunpack.c.h.b16 %v2153
    %v2315 = vunpack.c.l.b16 %v2154
    %v2316 = vunpack.c.h.b16 %v2154
    %v2317 = vunpack.c.l.b16 %v2155
    %v2318 = vunpack.c.h.b16 %v2155
    %v2319 = vunpack.c.l.b16 %v2156
    %v2320 = vunpack.c.h.b16 %v2156
    %v2321 = vunpack.c.l.b16 %v2157
    %v2322 = vunpack.c.h.b16 %v2157
    %v2323 = vunpack.c.l.b16 %v2158
    %v2324 = vunpack.c.h.b16 %v2158
    %v2325 = vunpack.c.l.b16 %v2159
    %v2326 = vunpack.c.h.b16 %v2159
    %v2327 = vunpack.c.l.b16 %v2160
    %v2328 = vunpack.c.h.b16 %v2160
    %v2329 = vunpack.c.l.b16 %v2161
    %v2330 = vunpack.c.h.b16 %v2161
    %v2331 = vunpack.c.l.b16 %v2162
    %v2332 = vunpack.c.h.b16 %v2162
    %v2333 = vunpack.c.l.b16 %v2163
    %v2334 = vunpack.c.h.b16 %v2163
    %v2335 = vunpack.c.l.b16 %v2164
    %v2336 = vunpack.c.h.b16 %v2164
    %v2337 = vunpack.c.l.b16 %v2165
    %v2338 = vunpack.c.h.b16 %v2165
    %v2339 = vunpack.c.l.b16 %v2166
    %v2340 = vunpack.c.h.b16 %v2166
    %v2341 = vunpack.c.l.b16 %v2167
    %v2342 = vunpack.c.h.b16 %v2167
    %v2343 = vunpack.c.l.b16 %v2168
    %v2344 = vunpack.c.h.b16 %v2168
    %v2345 = vunpack.c.l.b16 %v2169
    %v2346 = vunpack.c.h.b16 %v2169
    %v2347 = vunpack.c.l.b16 %v2170
    %v2348 = vunpack.c.h.b16 %v2170
    %v2349 = vunpack.c.l.b16 %v2171
    %v2350 = vunpack.c.h.b16 %v2171
    %v2351 = vunpack.c.l.b16 %v2172
    %v2352 = vunpack.c.h.b16 %v2172
    %v2353 = vunpack.c.l.b16 %v2173
    %v2354 = vunpack.c.h.b16 %v2173
    %v2355 = vunpack.c.l.b16 %v2174
    %v2356 = vunpack.c.h.b16 %v2174
    %v2357 = vunpack.c.l.b16 %v2175
    %v2358 = vunpack.c.h.b16 %v2175
    %v2359 = vunpack.c.l.b16 %v2176
    %v2360 = vunpack.c.h.b16 %v2176
    %v2361 = vunpack.c.l.b16 %v2177
    %v2362 = vunpack.c.h.b16 %v2177
    %v2363 = vunpack.c.l.b16 %v2178
    %v2364 = vunpack.c.h.b16 %v2178
    %v2365 = vunpack.c.l.b16 %v2179
    %v2366 = vunpack.c.h.b16 %v2179
    %v2367 = vunpack.c.l.b16 %v2180
    %v2368 = vunpack.c.h.b16 %v2180
    %v2369 = vunpack.c.l.b16 %v2181
    %v2370 = vunpack.c.h.b16 %v2181
    %v2371 = vunpack.c.l.b16 %v2182
    %v2372 = vunpack.c.h.b16 %v2182
    %v2373 = vunpack.c.l.b16 %v2183
    %v2374 = vunpack.c.h.b16 %v2183
    %v2375 = vunpack.c.l.b16 %v2184
    %v2376 = vunpack.c.h.b16 %v2184
    %v2377 = vunpack.c.l.b16 %v2185
    %v2378 = vunpack.c.h.b16 %v2185
    %v2379 = vunpack.c.l.b16 %v2186
    %v2380 = vunpack.c.h.b16 %v2186
    %v2381 = vunpack.c.l.b16 %v2187
    %v2382 = vunpack.c.h.b16 %v2187
    %v2383 = vunpack.c.l.b16 %v2188
    %v2384 = vunpack.c.h.b16 %v2188
    %v2385 = vunpack.c.l.b16 %v2189
    %v2386 = vunpack.c.h.b16 %v2189
    %v2387 = vunpack.c.l.b16 %v2190
    %v2388 = vunpack.c.h.b16 %v2190
    %v2389 = vpack.c.b16 %v2263, %v2261
    %v2390 = vpack.c.b16 %v2264, %v2262
    %v2391 = vpack.c.b16 %v2267, %v2265
    %v2392 = vpack.c.b16 %v2268, %v2266
    %v2393 = vpack.c.b16 %v2271, %v2269
    %v2394 = vpack.c.b16 %v2272, %v2270
    %v2395 = vpack.c.b16 %v2275, %v2273
    %v2396 = vpack.c.b16 %v2276, %v2274
    %v2397 = vpack.c.b16 %v2279, %v2277
    %v2398 = vpack.c.b16 %v2280, %v2278
    %v2399 = vpack.c.b16 %v2283, %v2281
    %v2400 = vpack.c.b16 %v2284, %v2282
    %v2401 = vpack.c.b16 %v2287, %v2285
    %v2402 = vpack.c.b16 %v2288, %v2286
    %v2403 = vpack.c.b16 %v2291, %v2289
    %v2404 = vpack.c.b16 %v2292, %v2290
    %v2405 = vpack.c.b16 %v2295, %v2293
    %v2406 = vpack.c.b16 %v2296, %v2294
    %v2407 = vpack.c.b16 %v2299, %v2297
    %v2408 = vpack.c.b16 %v2300, %v2298
    %v2409 = vpack.c.b16 %v2303, %v2301
    %v2410 = vpack.c.b16 %v2304, %v2302
    %v2411 = vpack.c.b16 %v2307, %v2305
    %v2412 = vpack.c.b16 %v2308, %v2306
    %v2413 = vpack.c.b16 %v2311, %v2309
    %v2414 = vpack.c.b16 %v2312, %v2310
    %v2415 = vpack.c.b16 %v2315, %v2313
    %v2416 = vpack.c.b16 %v2316, %v2314
    %v2417 = vpack.c.b16 %v2319, %v2317
    %v2418 = vpack.c.b16 %v2320, %v2318
    %v2419 = vpack.c.b16 %v2323, %v2321
    %v2420 = vpack.c.b16 %v2324, %v2322
    %v2421 = vpack.c.b16 %v2327, %v2325
    %v2422 = vpack.c.b16 %v2328, %v2326
    %v2423 = vpack.c.b16 %v2331, %v2329
    %v2424 = vpack.c.b16 %v2332, %v2330
    %v2425 = vpack.c.b16 %v2335, %v2333
    %v2426 = vpack.c.b16 %v2336, %v2334
    %v2427 = vpack.c.b16 %v2339, %v2337
    %v2428 = vpack.c.b16 %v2340, %v2338
    %v2429 = vpack.c.b16 %v2343, %v2341
    %v2430 = vpack.c.b16 %v2344, %v2342
    %v2431 = vpack.c.b16 %v2347, %v2345
    %v2432 = vpack.c.b16 %v2348, %v2346
    %v2433 = vpack.c.b16 %v2351, %v2349
    %v2434 = vpack.c.b16 %v2352, %v2350
    %v2435 = vpack.c.b16 %v2355, %v2353
    %v2436 = vpack.c.b16 %v2356, %v2354
    %v2437 = vpack.c.b16 %v2359, %v2357
    %v2438 = vpack.c.b16 %v2360, %v2358
    %v2439 = vpack.c.b16 %v2363, %v2361
    %v2440 = vpack.c.b16 %v2364, %v2362
    %v2441 = vpack.c.b16 %v2367, %v2365
    %v2442 = vpack.c.b16 %v2368, %v2366
    %v2443 = vpack.c.b16 %v2371, %v2369
    %v2444 = vpack.c.b16 %v2372, %v2370
    %v2445 = vpack.c.b16 %v2375, %v2373
    %v2446 = vpack.c.b16 %v2376, %v2374
    %v2447 = vpack.c.b16 %v2379, %v2377
    %v2448 = vpack.c.b16 %v2380, %v2378
    %v2449 = vpack.c.b16 %v2383, %v2381
    %v2450 = vpack.c.b16 %v2384, %v2382
    %v2451 = vpack.c.b16 %v2387, %v2385
    %v2452 = vpack.c.b16 %v2388, %v2386
    %2517 = vmatpush.bf16.msra.mxu0 %v2403
    %2518 = vmatpush.bf16.msra.mxu0 %v2401
    %2519 = vmatpush.bf16.msra.mxu0 %v2399
    %2520 = vmatpush.bf16.msra.mxu0 %v2397
    %2521 = vmatpush.bf16.msra.mxu0 %v2395
    %2522 = vmatpush.bf16.msra.mxu0 %v2393
    %2523 = vmatpush.bf16.msra.mxu0 %v2391
    %2524 = vmatpush.bf16.msra.mxu0 %v2389
    %2525 = vmatmul.bf16.gmra.mxu0 %v2123
    %v2526 = vpop.f32.mrf.mxu0
    %v2527 = vadd.f32 %v2193, %v2526
    %v2528 = vpop.f32.mrf.mxu0
    %2529 = vdwg.mxu0
    %2530 = vmatpush.bf16.msra.mxu0 %v2419
    %2531 = vmatpush.bf16.msra.mxu0 %v2417
    %2532 = vmatpush.bf16.msra.mxu0 %v2415
    %2533 = vmatpush.bf16.msra.mxu0 %v2413
    %2534 = vmatpush.bf16.msra.mxu0 %v2411
    %2535 = vmatpush.bf16.msra.mxu0 %v2409
    %2536 = vmatpush.bf16.msra.mxu0 %v2407
    %2537 = vmatpush.bf16.msra.mxu0 %v2405
    %2538 = vmatmul.bf16.gmra.mxu0 %v2124
    %v2539 = vpop.f32.mrf.mxu0
    %v2540 = vadd.f32 %v2527, %v2539
    %v2541 = vpop.f32.mrf.mxu0
    %2542 = vdwg.mxu0
    %2543 = vmatpush.bf16.msra.mxu0 %v2435
    %2544 = vmatpush.bf16.msra.mxu0 %v2433
    %2545 = vmatpush.bf16.msra.mxu0 %v2431
    %2546 = vmatpush.bf16.msra.mxu0 %v2429
    %2547 = vmatpush.bf16.msra.mxu0 %v2427
    %2548 = vmatpush.bf16.msra.mxu0 %v2425
    %2549 = vmatpush.bf16.msra.mxu0 %v2423
    %2550 = vmatpush.bf16.msra.mxu0 %v2421
    %2551 = vmatmul.bf16.gmra.mxu0 %v2125
    %v2552 = vpop.f32.mrf.mxu0
    %v2553 = vadd.f32 %v2540, %v2552
    %v2554 = vpop.f32.mrf.mxu0
    %2555 = vdwg.mxu0
    %2556 = vmatpush.bf16.msra.mxu0 %v2451
    %2557 = vmatpush.bf16.msra.mxu0 %v2449
    %2558 = vmatpush.bf16.msra.mxu0 %v2447
    %2559 = vmatpush.bf16.msra.mxu0 %v2445
    %2560 = vmatpush.bf16.msra.mxu0 %v2443
    %2561 = vmatpush.bf16.msra.mxu0 %v2441
    %2562 = vmatpush.bf16.msra.mxu0 %v2439
    %2563 = vmatpush.bf16.msra.mxu0 %v2437
    %2564 = vmatmul.bf16.gmra.mxu0 %v2126
    %v2565 = vpop.f32.mrf.mxu0
    %v2566 = vadd.f32 %v2553, %v2565
    %v2567 = vpop.f32.mrf.mxu0
    %2568 = vdwg.mxu0
    %2569 = vmatpush.bf16.msra.mxu0 %v2404
    %2570 = vmatpush.bf16.msra.mxu0 %v2402
    %2571 = vmatpush.bf16.msra.mxu0 %v2400
    %2572 = vmatpush.bf16.msra.mxu0 %v2398
    %2573 = vmatpush.bf16.msra.mxu0 %v2396
    %2574 = vmatpush.bf16.msra.mxu0 %v2394
    %2575 = vmatpush.bf16.msra.mxu0 %v2392
    %2576 = vmatpush.bf16.msra.mxu0 %v2390
    %2577 = vmatmul.bf16.gmra.mxu0 %v2123
    %v2578 = vpop.f32.mrf.mxu0
    %v2579 = vadd.f32 %v2194, %v2578
    %v2580 = vpop.f32.mrf.mxu0
    %2581 = vdwg.mxu0
    %2582 = vmatpush.bf16.msra.mxu0 %v2420
    %2583 = vmatpush.bf16.msra.mxu0 %v2418
    %2584 = vmatpush.bf16.msra.mxu0 %v2416
    %2585 = vmatpush.bf16.msra.mxu0 %v2414
    %2586 = vmatpush.bf16.msra.mxu0 %v2412
    %2587 = vmatpush.bf16.msra.mxu0 %v2410
    %2588 = vmatpush.bf16.msra.mxu0 %v2408
    %2589 = vmatpush.bf16.msra.mxu0 %v2406
    %2590 = vmatmul.bf16.gmra.mxu0 %v2124
    %v2591 = vpop.f32.mrf.mxu0
    %v2592 = vadd.f32 %v2579, %v2591
    %v2593 = vpop.f32.mrf.mxu0
    %2594 = vdwg.mxu0
    %2595 = vmatpush.bf16.msra.mxu0 %v2436
    %2596 = vmatpush.bf16.msra.mxu0 %v2434
    %2597 = vmatpush.bf16.msra.mxu0 %v2432
    %2598 = vmatpush.bf16.msra.mxu0 %v2430
    %2599 = vmatpush.bf16.msra.mxu0 %v2428
    %2600 = vmatpush.bf16.msra.mxu0 %v2426
    %2601 = vmatpush.bf16.msra.mxu0 %v2424
    %2602 = vmatpush.bf16.msra.mxu0 %v2422
    %2603 = vmatmul.bf16.gmra.mxu0 %v2125
    %v2604 = vpop.f32.mrf.mxu0
    %v2605 = vadd.f32 %v2592, %v2604
    %v2606 = vpop.f32.mrf.mxu0
    %2607 = vdwg.mxu0
    %2608 = vmatpush.bf16.msra.mxu0 %v2452
    %2609 = vmatpush.bf16.msra.mxu0 %v2450
    %2610 = vmatpush.bf16.msra.mxu0 %v2448
    %2611 = vmatpush.bf16.msra.mxu0 %v2446
    %2612 = vmatpush.bf16.msra.mxu0 %v2444
    %2613 = vmatpush.bf16.msra.mxu0 %v2442
    %2614 = vmatpush.bf16.msra.mxu0 %v2440
    %2615 = vmatpush.bf16.msra.mxu0 %v2438
    %2616 = vmatmul.bf16.gmra.mxu0 %v2126
    %v2617 = vpop.f32.mrf.mxu0
    %v2618 = vadd.f32 %v2605, %v2617
    %v2619 = vpop.f32.mrf.mxu0
    %2620 = vdwg.mxu0
    %v2621 = vsub.f32 0.0, %v2566
    %v2622 = vsub.f32 0.0, %v2618
    %v2623 = vmul.f32 %v2621, 1.442695
    %v2624 = vpow.pop %v2623
    %v2625 = vmul.f32 %v2622, 1.442695
    %v2626 = vpow.pop %v2625
    %v2627 = vadd.f32 %v2624, 1.0
    %v2628 = vadd.f32 %v2626, 1.0
    %v2629 = vrcp.pop %v2627
    %v2630 = vrcp.pop %v2628
    %2631 = vst [vmem:[#allocation19] sm:$0xff] %v2629
    %2632 = vst [vmem:[#allocation19 + $0x8] sm:$0xff] %v2630
    %2633 = vst [vmem:[#allocation20] sm:$0xff] %v1440
    %2634 = vst [vmem:[#allocation20 + $0x8] sm:$0xff] %v1466
    %2635 = vst [vmem:[#allocation20 + $0x10] sm:$0xff] %v1475
    // Predicated region
    $region98: #{tpu_custom_call.1} parent=1 // pred_check
      _
    $region99: #{tpu_custom_call.1} parent=1 // pred_check_branch
      %2637 = sbr.rel (0) target = $region101
    $region100: #{tpu_custom_call.1} parent=1 // pred_region
      %2639 = vsyncadd [#allocation4], 0
      %s2641 = sshll.u32 [#allocation19], 4
      %s2642 = int_to_ptr.vmem [resolvable:$true] %s2641
      %s2643 = sshll.u32 %s14, 4
      %s2644 = int_to_ptr.hbm [resolvable:$true] %s2643
      %2646 = dma.vmem_to_hbm [thread:$0]  %s2642, 256, %s2644, [#allocation4]
    $region101: #{tpu_custom_call.1} parent=1 // pred_fallthru
      _
    // Predicated region
    $region102: #{tpu_custom_call.1} parent=1 // pred_check
      _
    $region103: #{tpu_custom_call.1} parent=1 // pred_check_branch
      %2648 = sbr.rel (0) target = $region105
    $region104: #{tpu_custom_call.1} parent=1 // pred_region
      %2650 = vsyncadd [#allocation21], 0
      %s2652 = sshll.u32 [#allocation20], 4
      %s2653 = int_to_ptr.vmem [resolvable:$true] %s2652
      %s2654 = sshll.u32 %s15, 4
      %s2655 = int_to_ptr.hbm [resolvable:$true] %s2654
      %2657 = dma.vmem_to_hbm [thread:$0]  %s2653, 384, %s2655, [#allocation21]
    $region105: #{tpu_custom_call.1} parent=1 // pred_fallthru
      _
    // Predicated region
    $region106: #{tpu_custom_call.1} parent=1 // pred_check
      _
    $region107: #{tpu_custom_call.1} parent=1 // pred_check_branch
      %2659 = sbr.rel (0) target = $region109
    $region108: #{tpu_custom_call.1} parent=1 // pred_region
      %2661 = dma.done [#allocation4], 256
    $region109: #{tpu_custom_call.1} parent=1 // pred_fallthru
      _
    // Predicated region
    $region110: #{tpu_custom_call.1} parent=1 // pred_check
      _
    $region111: #{tpu_custom_call.1} parent=1 // pred_check_branch
      %2663 = sbr.rel (0) target = $region113
    $region112: #{tpu_custom_call.1} parent=1 // pred_region
      %2665 = dma.done [#allocation21], 384
    $region113: #{tpu_custom_call.1} parent=1 // pred_fallthru
      _
    %2666 = vsyncpa [#allocation3], 1
    %2667 = vsyncpa [#allocation6], 1
    %2668 = vsyncpa [#allocation9], 1
    %2669 = vsyncpa [#allocation12], 1
    %2670 = vsyncpa [#allocation15], 1
    %2671 = vsyncpa [#allocation18], 1
    %2672 = vsyncpa [#allocation4], 1
    %2673 = vsyncpa [#allocation21], 1

</llo_original>
